<compile_context>
chip_gen: v7x
topology: tpu7x:2x2x1
jax: 0.10.0
libtpu: 0.0.40
codegen_flags: <defaults>
</compile_context>

<pallas_src>
import functools

import jax
import jax.numpy as jnp
from jax import lax
from jax.experimental import pallas as pl
from jax.experimental.pallas import tpu as pltpu

_SLOPE = 0.2            # LeakyReLU negative slope from the PyTorch module
_BN_EPS = 1e-5          # nn.BatchNorm2d default eps
_HEAD_ROW_TILE = 512    # pixel rows per grid step for the head kernel
_TAIL_ROW_TILE = 256    # pixel rows per grid step for the tail kernel (9x wider inputs)


def _pick_row_tile(m, target):
    """Largest multiple-of-8 divisor of m that is <= target (else full m)."""
    if m <= target:
        return m
    t = (target // 8) * 8
    while t >= 8:
        if m % t == 0:
            return t
        t -= 8
    return m


def _leaky_relu(y, slope):
    return jnp.where(y >= 0, y, slope * y)


def _head_kernel(x_ref, s11_ref, b11_ref, s21_ref, b21_ref, w21_ref, b22_ref,
                 a1_ref, v2_ref, *, slope):
    """Per pixel-row tile:
         a1 = lrelu(bn1a(x))                            (input to b1's 3x3 s2 conv)
         v2 = lrelu(lrelu(bn2a(x)) @ W21' + b2b)        (input to b2's 3x3 s2 conv)
       where W21' already carries bn2b's scale (folded in the wrapper).
    """
    x = x_ref[...]
    a1_ref[...] = _leaky_relu(x * s11_ref[...] + b11_ref[...], slope).astype(a1_ref.dtype)
    t2 = _leaky_relu(x * s21_ref[...] + b21_ref[...], slope)
    u2 = jnp.dot(t2, w21_ref[...], preferred_element_type=jnp.float32)
    v2_ref[...] = _leaky_relu(u2 + b22_ref[...], slope).astype(v2_ref.dtype)


def _tail_kernel(p1_ref, w11_ref, b12_ref, w12_ref, p2_ref, w22_ref,
                 o1_ref, o2_ref, *, slope):
    """Per output pixel-row tile:
         u1 = p1 @ W11'               (b1's 3x3 s2 conv; bn1b scale folded into W11')
         o1 = lrelu(u1 + b1b) @ W12   (b1's 1x1 conv)
         o2 = p2 @ W22                (b2's 3x3 s2 conv)
       Each branch gets its own contiguous, lane-dense output store; the
       channel shuffle is applied in the wrapper's output transpose.
    """
    u1 = jnp.dot(p1_ref[...], w11_ref[...], preferred_element_type=jnp.float32)
    a1 = _leaky_relu(u1 + b12_ref[...], slope)
    o1_ref[...] = jnp.dot(a1, w12_ref[...],
                          preferred_element_type=jnp.float32).astype(o1_ref.dtype)
    o2_ref[...] = jnp.dot(p2_ref[...], w22_ref[...],
                          preferred_element_type=jnp.float32).astype(o2_ref.dtype)


def _fold_bn(gamma, beta, mean, var, eps=_BN_EPS):
    s = gamma / jnp.sqrt(var + eps)
    b = beta - mean * s
    return (s.reshape(1, -1).astype(jnp.float32),
            b.reshape(1, -1).astype(jnp.float32))


def _im2col_3x3_s2(x_nhwc):
    """3x3, stride 2, pad 1 patch extraction -> ((N*Ho*Wo, 9*C), (Ho, Wo))."""
    n, h, w, c = x_nhwc.shape
    ho = (h - 1) // 2 + 1
    wo = (w - 1) // 2 + 1
    xp = jnp.pad(x_nhwc, ((0, 0), (1, 1), (1, 1), (0, 0)))
    cols = []
    for di in range(3):
        for dj in range(3):
            cols.append(xp[:, di:di + 2 * (ho - 1) + 1:2,
                           dj:dj + 2 * (wo - 1) + 1:2, :])
    patches = jnp.concatenate(cols, axis=-1)          # (N, Ho, Wo, 9*C), (di,dj,c) order
    return patches.reshape(n * ho * wo, 9 * c), (ho, wo)


def _conv_w_to_mat_3x3(w):
    # (Cout, Cin, 3, 3) -> (9*Cin, Cout), rows ordered (di, dj, c) to match im2col.
    cout, cin = w.shape[0], w.shape[1]
    return jnp.transpose(w, (2, 3, 1, 0)).reshape(9 * cin, cout).astype(jnp.float32)


def _conv_w_to_mat_1x1(w):
    # (Cout, Cin, 1, 1) -> (Cin, Cout)
    cout, cin = w.shape[0], w.shape[1]
    return jnp.transpose(w.reshape(cout, cin), (1, 0)).astype(jnp.float32)


def down_block(x, params, *, slope=_SLOPE, eps=_BN_EPS, interpret=False):
    """Pallas TPU forward of DownBlock (inference-mode BatchNorm). x is NCHW."""
    n, cin, h, w = x.shape
    w11m = _conv_w_to_mat_3x3(params["w11"])
    w12m = _conv_w_to_mat_1x1(params["w12"])
    w21m = _conv_w_to_mat_1x1(params["w21"])
    w22m = _conv_w_to_mat_3x3(params["w22"])
    mid = w21m.shape[1]

    s11, b11 = _fold_bn(*params["bn1a"], eps)
    s12, b12 = _fold_bn(*params["bn1b"], eps)
    s21, b21 = _fold_bn(*params["bn2a"], eps)
    s22, b22 = _fold_bn(*params["bn2b"], eps)

    # Fold post-conv BN scales into the corresponding conv weight columns
    # (free in the wrapper; removes one vector multiply per element in-kernel).
    w11m = w11m * s12          # bn1b follows W11 (3x3 s2)
    w21m = w21m * s22          # bn2b follows W21 (1x1)

    # Pixels on sublanes, channels on lanes (conv-as-GEMM layout).
    x_flat = jnp.transpose(x, (0, 2, 3, 1)).reshape(n * h * w, cin).astype(jnp.float32)

    cparams = pltpu.CompilerParams(
        dimension_semantics=("parallel",),          # row tiles independent (v7x: 2 TCs)
        vmem_limit_bytes=32 * 1024 * 1024,
    )
    bcast = lambda shape: pl.BlockSpec(shape, lambda i: (0, 0))

    # ---- head: full-resolution pointwise work + b2's 1x1 conv ----
    m1 = n * h * w
    tm1 = _pick_row_tile(m1, _HEAD_ROW_TILE)
    a1_flat, v2_flat = pl.pallas_call(
        functools.partial(_head_kernel, slope=slope),
        out_shape=(jax.ShapeDtypeStruct((m1, cin), jnp.float32),
                   jax.ShapeDtypeStruct((m1, mid), jnp.float32)),
        grid=(m1 // tm1,),
        in_specs=[
            pl.BlockSpec((tm1, cin), lambda i: (i, 0)),   # x tile
            bcast((1, cin)), bcast((1, cin)),             # bn1a scale/shift
            bcast((1, cin)), bcast((1, cin)),             # bn2a scale/shift
            bcast((cin, mid)),                            # W21' (1x1 conv, bn2b-scaled)
            bcast((1, mid)),                              # bn2b shift
        ],
        out_specs=(pl.BlockSpec((tm1, cin), lambda i: (i, 0)),
                   pl.BlockSpec((tm1, mid), lambda i: (i, 0))),
        compiler_params=cparams,
        interpret=interpret,
    )(x_flat, s11, b11, s21, b21, w21m, b22)

    # TODO(synk): 3x3/stride-2 patch extraction (im2col) stays in the JAX wrapper;
    # it is pure layout (no FLOPs) and could be moved in-kernel with strided DMA
    # gathers if these copies ever show up in profiles.
    p1, (ho, wo) = _im2col_3x3_s2(a1_flat.reshape(n, h, w, cin))
    p2, _ = _im2col_3x3_s2(v2_flat.reshape(n, h, w, mid))

    # ---- tail: strided convs + b1's 1x1 conv; per-branch lane-dense outputs ----
    m2 = n * ho * wo
    tm2 = _pick_row_tile(m2, _TAIL_ROW_TILE)
    o1_flat, o2_flat = pl.pallas_call(
        functools.partial(_tail_kernel, slope=slope),
        out_shape=(jax.ShapeDtypeStruct((m2, mid), jnp.float32),
                   jax.ShapeDtypeStruct((m2, mid), jnp.float32)),
        grid=(m2 // tm2,),
        in_specs=[
            pl.BlockSpec((tm2, 9 * cin), lambda i: (i, 0)),   # p1 tile
            bcast((9 * cin, cin)),                            # W11' (3x3 s2, bn1b-scaled)
            bcast((1, cin)),                                  # bn1b shift
            bcast((cin, mid)),                                # W12 (1x1 conv)
            pl.BlockSpec((tm2, 9 * mid), lambda i: (i, 0)),   # p2 tile
            bcast((9 * mid, mid)),                            # W22 (3x3 s2 conv)
        ],
        out_specs=(pl.BlockSpec((tm2, mid), lambda i: (i, 0)),
                   pl.BlockSpec((tm2, mid), lambda i: (i, 0))),
        compiler_params=cparams,
        interpret=interpret,
    )(p1, w11m, b12, w12m, p2, w22m)

    # Channel shuffle (g=2) folded into the single NHWC->NCHW output transpose:
    # out[:, 2*j + k] = branch_k channel j.
    o1n = o1_flat.reshape(n, ho, wo, mid)
    o2n = o2_flat.reshape(n, ho, wo, mid)
    out = jnp.stack([o1n, o2n], axis=-1)                     # (n, ho, wo, mid, 2)
    out = jnp.transpose(out, (0, 3, 4, 1, 2)).reshape(n, 2 * mid, ho, wo)
    return out.astype(x.dtype)


# ---------------------------- pure-JAX reference ----------------------------
def _bn_lrelu_ref(x, gamma, beta, mean, var, eps=_BN_EPS, slope=_SLOPE):
    s = gamma / jnp.sqrt(var + eps)
    b = beta - mean * s
    y = x * s[None, :, None, None] + b[None, :, None, None]
    return jnp.where(y >= 0, y, slope * y)


def _conv_ref(x, w, stride, pad):
    return lax.conv_general_dilated(
        x, w, window_strides=(stride, stride), padding=((pad, pad), (pad, pad)),
        dimension_numbers=("NCHW", "OIHW", "NCHW"),
        precision=lax.Precision.HIGHEST)


def _down_block_ref(x, p):
    t1 = _bn_lrelu_ref(x, *p["bn1a"])
    u1 = _conv_ref(t1, p["w11"], 2, 1)
    v1 = _bn_lrelu_ref(u1, *p["bn1b"])
    o1 = _conv_ref(v1, p["w12"], 1, 0)

    t2 = _bn_lrelu_ref(x, *p["bn2a"])
    u2 = _conv_ref(t2, p["w21"], 1, 0)
    v2 = _bn_lrelu_ref(u2, *p["bn2b"])
    o2 = _conv_ref(v2, p["w22"], 2, 1)

    out = jnp.concatenate([o1, o2], axis=1)
    n, c, ho, wo = out.shape
    return out.reshape(n, 2, c // 2, ho, wo).transpose(0, 2, 1, 3, 4).reshape(n, c, ho, wo)


if __name__ == "__main__":
    key = jax.random.PRNGKey(0)
    n, cin, h, w = 2, 4, 16, 16
    out_channels = 8
    mid = out_channels // 2

    keys = jax.random.split(key, 9)

    def bn_params(k, c):
        k1, k2, k3, k4 = jax.random.split(k, 4)
        gamma = 1.0 + 0.1 * jax.random.normal(k1, (c,), jnp.float32)
        beta = 0.1 * jax.random.normal(k2, (c,), jnp.float32)
        mean = 0.1 * jax.random.normal(k3, (c,), jnp.float32)
        var = 0.5 + jnp.abs(jax.random.normal(k4, (c,), jnp.float32))
        return gamma, beta, mean, var

    x = jax.random.normal(keys[0], (n, cin, h, w), jnp.float32)
    params = {
        "w11": 0.3 * jax.random.normal(keys[1], (cin, cin, 3, 3), jnp.float32),
        "w12": 0.3 * jax.random.normal(keys[2], (mid, cin, 1, 1), jnp.float32),
        "w21": 0.3 * jax.random.normal(keys[3], (mid, cin, 1, 1), jnp.float32),
        "w22": 0.3 * jax.random.normal(keys[4], (mid, mid, 3, 3), jnp.float32),
        "bn1a": bn_params(keys[5], cin),
        "bn1b": bn_params(keys[6], cin),
        "bn2a": bn_params(keys[7], cin),
        "bn2b": bn_params(keys[8], mid),
    }

    out = jax.jit(down_block)(x, params)
    out = jax.block_until_ready(out)

    ref = _down_block_ref(x, params)
    assert out.shape == ref.shape == (n, out_channels, h // 2, w // 2), (out.shape, ref.shape)
    assert jnp.allclose(out, ref, atol=1e-2, rtol=1e-2), float(jnp.max(jnp.abs(out - ref)))

    print("KERNEL_OK")
</pallas_src>

<mosaic_0001>
module attributes {stable_mosaic.version = 11 : i64} {
  func.func @_head_kernel(%arg0: i32, %arg1: memref<512x4xf32, #tpu.memory_space<vmem>>, %arg2: memref<1x4xf32, #tpu.memory_space<vmem>>, %arg3: memref<1x4xf32, #tpu.memory_space<vmem>>, %arg4: memref<1x4xf32, #tpu.memory_space<vmem>>, %arg5: memref<1x4xf32, #tpu.memory_space<vmem>>, %arg6: memref<4x4xf32, #tpu.memory_space<vmem>>, %arg7: memref<1x4xf32, #tpu.memory_space<vmem>>, %arg8: memref<512x4xf32, #tpu.memory_space<vmem>>, %arg9: memref<512x4xf32, #tpu.memory_space<vmem>>) attributes {dimension_semantics = [#tpu.dimension_semantics<parallel>], iteration_bounds = array<i64: 1>, scalar_prefetch = 0 : i64, scratch_operands = 0 : i64, tpu.core_type = #tpu.core_type<tc>, window_params = [{transform_indices = @transform_0, window_bounds = array<i64: 512, 4>}, {pipeline_mode = #tpu.pipeline_mode<synchronous>, transform_indices = @transform_1, window_bounds = array<i64: 1, 4>}, {pipeline_mode = #tpu.pipeline_mode<synchronous>, transform_indices = @transform_2, window_bounds = array<i64: 1, 4>}, {pipeline_mode = #tpu.pipeline_mode<synchronous>, transform_indices = @transform_3, window_bounds = array<i64: 1, 4>}, {pipeline_mode = #tpu.pipeline_mode<synchronous>, transform_indices = @transform_4, window_bounds = array<i64: 1, 4>}, {pipeline_mode = #tpu.pipeline_mode<synchronous>, transform_indices = @transform_5, window_bounds = array<i64: 4, 4>}, {pipeline_mode = #tpu.pipeline_mode<synchronous>, transform_indices = @transform_6, window_bounds = array<i64: 1, 4>}, {transform_indices = @transform_7, window_bounds = array<i64: 512, 4>}, {transform_indices = @transform_8, window_bounds = array<i64: 512, 4>}]} {
    %c0 = arith.constant 0 : index
    %c0_0 = arith.constant 0 : index
    %0 = vector.load %arg1[%c0, %c0_0] : memref<512x4xf32, #tpu.memory_space<vmem>>, vector<512x4xf32>
    %c0_1 = arith.constant 0 : index
    %c0_2 = arith.constant 0 : index
    %1 = vector.load %arg2[%c0_1, %c0_2] : memref<1x4xf32, #tpu.memory_space<vmem>>, vector<1x4xf32>
    %2 = vector.broadcast %1 : vector<1x4xf32> to vector<512x4xf32>
    %3 = arith.mulf %0, %2 : vector<512x4xf32>
    %c0_3 = arith.constant 0 : index
    %c0_4 = arith.constant 0 : index
    %4 = vector.load %arg3[%c0_3, %c0_4] : memref<1x4xf32, #tpu.memory_space<vmem>>, vector<1x4xf32>
    %5 = vector.broadcast %4 : vector<1x4xf32> to vector<512x4xf32>
    %6 = arith.addf %3, %5 : vector<512x4xf32>
    %cst = arith.constant 0.000000e+00 : f32
    %7 = vector.broadcast %cst : f32 to vector<512x4xf32>
    %8 = arith.cmpf oge, %6, %7 : vector<512x4xf32>
    %cst_5 = arith.constant 2.000000e-01 : f32
    %9 = vector.broadcast %cst_5 : f32 to vector<512x4xf32>
    %10 = arith.mulf %9, %6 : vector<512x4xf32>
    %11 = arith.select %8, %6, %10 : vector<512x4xi1>, vector<512x4xf32>
    %c0_6 = arith.constant 0 : index
    %c0_7 = arith.constant 0 : index
    %12 = vector.load %arg8[%c0_6, %c0_7] : memref<512x4xf32, #tpu.memory_space<vmem>>, vector<512x4xf32>
    tpu.vector_store %arg8[%c0_6, %c0_7], %11 {strides = array<i32>} : memref<512x4xf32, #tpu.memory_space<vmem>>, vector<512x4xf32>,
    %c0_8 = arith.constant 0 : index
    %c0_9 = arith.constant 0 : index
    %13 = vector.load %arg4[%c0_8, %c0_9] : memref<1x4xf32, #tpu.memory_space<vmem>>, vector<1x4xf32>
    %14 = vector.broadcast %13 : vector<1x4xf32> to vector<512x4xf32>
    %15 = arith.mulf %0, %14 : vector<512x4xf32>
    %c0_10 = arith.constant 0 : index
    %c0_11 = arith.constant 0 : index
    %16 = vector.load %arg5[%c0_10, %c0_11] : memref<1x4xf32, #tpu.memory_space<vmem>>, vector<1x4xf32>
    %17 = vector.broadcast %16 : vector<1x4xf32> to vector<512x4xf32>
    %18 = arith.addf %15, %17 : vector<512x4xf32>
    %cst_12 = arith.constant 0.000000e+00 : f32
    %19 = vector.broadcast %cst_12 : f32 to vector<512x4xf32>
    %20 = arith.cmpf oge, %18, %19 : vector<512x4xf32>
    %cst_13 = arith.constant 2.000000e-01 : f32
    %21 = vector.broadcast %cst_13 : f32 to vector<512x4xf32>
    %22 = arith.mulf %21, %18 : vector<512x4xf32>
    %23 = arith.select %20, %18, %22 : vector<512x4xi1>, vector<512x4xf32>
    %c0_14 = arith.constant 0 : index
    %c0_15 = arith.constant 0 : index
    %24 = vector.load %arg6[%c0_14, %c0_15] : memref<4x4xf32, #tpu.memory_space<vmem>>, vector<4x4xf32>
    %cst_16 = arith.constant dense<0.000000e+00> : vector<512x4xf32>
    %25 = tpu.matmul %23, %24, %cst_16 {dimension_numbers = #tpu.dot_dimension_numbers<[1], [0], [0], [1], [0, 0, 1, 1], [], []>} : vector<512x4xf32>, vector<4x4xf32>, vector<512x4xf32> -> vector<512x4xf32>
    %c0_17 = arith.constant 0 : index
    %c0_18 = arith.constant 0 : index
    %26 = vector.load %arg7[%c0_17, %c0_18] : memref<1x4xf32, #tpu.memory_space<vmem>>, vector<1x4xf32>
    %27 = vector.broadcast %26 : vector<1x4xf32> to vector<512x4xf32>
    %28 = arith.addf %25, %27 : vector<512x4xf32>
    %cst_19 = arith.constant 0.000000e+00 : f32
    %29 = vector.broadcast %cst_19 : f32 to vector<512x4xf32>
    %30 = arith.cmpf oge, %28, %29 : vector<512x4xf32>
    %cst_20 = arith.constant 2.000000e-01 : f32
    %31 = vector.broadcast %cst_20 : f32 to vector<512x4xf32>
    %32 = arith.mulf %31, %28 : vector<512x4xf32>
    %33 = arith.select %30, %28, %32 : vector<512x4xi1>, vector<512x4xf32>
    %c0_21 = arith.constant 0 : index
    %c0_22 = arith.constant 0 : index
    %34 = vector.load %arg9[%c0_21, %c0_22] : memref<512x4xf32, #tpu.memory_space<vmem>>, vector<512x4xf32>
    tpu.vector_store %arg9[%c0_21, %c0_22], %33 {strides = array<i32>} : memref<512x4xf32, #tpu.memory_space<vmem>>, vector<512x4xf32>,
    return
  }
  func.func @transform_0(%arg0: i32) -> (i32, i32) {
    %c0_i32 = arith.constant 0 : i32
    %c0_i32_0 = arith.constant 0 : i32
    return %arg0, %c0_i32 : i32, i32
  }
  func.func @transform_1(%arg0: i32) -> (i32, i32) {
    %c0_i32 = arith.constant 0 : i32
    %c0_i32_0 = arith.constant 0 : i32
    %c0_i32_1 = arith.constant 0 : i32
    return %c0_i32, %c0_i32_0 : i32, i32
  }
  func.func @transform_2(%arg0: i32) -> (i32, i32) {
    %c0_i32 = arith.constant 0 : i32
    %c0_i32_0 = arith.constant 0 : i32
    %c0_i32_1 = arith.constant 0 : i32
    return %c0_i32, %c0_i32_0 : i32, i32
  }
  func.func @transform_3(%arg0: i32) -> (i32, i32) {
    %c0_i32 = arith.constant 0 : i32
    %c0_i32_0 = arith.constant 0 : i32
    %c0_i32_1 = arith.constant 0 : i32
    return %c0_i32, %c0_i32_0 : i32, i32
  }
  func.func @transform_4(%arg0: i32) -> (i32, i32) {
    %c0_i32 = arith.constant 0 : i32
    %c0_i32_0 = arith.constant 0 : i32
    %c0_i32_1 = arith.constant 0 : i32
    return %c0_i32, %c0_i32_0 : i32, i32
  }
  func.func @transform_5(%arg0: i32) -> (i32, i32) {
    %c0_i32 = arith.constant 0 : i32
    %c0_i32_0 = arith.constant 0 : i32
    %c0_i32_1 = arith.constant 0 : i32
    return %c0_i32, %c0_i32_0 : i32, i32
  }
  func.func @transform_6(%arg0: i32) -> (i32, i32) {
    %c0_i32 = arith.constant 0 : i32
    %c0_i32_0 = arith.constant 0 : i32
    %c0_i32_1 = arith.constant 0 : i32
    return %c0_i32, %c0_i32_0 : i32, i32
  }
  func.func @transform_7(%arg0: i32) -> (i32, i32) {
    %c0_i32 = arith.constant 0 : i32
    %c0_i32_0 = arith.constant 0 : i32
    return %arg0, %c0_i32 : i32, i32
  }
  func.func @transform_8(%arg0: i32) -> (i32, i32) {
    %c0_i32 = arith.constant 0 : i32
    %c0_i32_0 = arith.constant 0 : i32
    return %arg0, %c0_i32 : i32, i32
  }
}

module attributes {stable_mosaic.version = 11 : i64} {
  func.func @_tail_kernel(%arg0: i32, %arg1: memref<128x36xf32, #tpu.memory_space<vmem>>, %arg2: memref<36x4xf32, #tpu.memory_space<vmem>>, %arg3: memref<1x4xf32, #tpu.memory_space<vmem>>, %arg4: memref<4x4xf32, #tpu.memory_space<vmem>>, %arg5: memref<128x36xf32, #tpu.memory_space<vmem>>, %arg6: memref<36x4xf32, #tpu.memory_space<vmem>>, %arg7: memref<128x4xf32, #tpu.memory_space<vmem>>, %arg8: memref<128x4xf32, #tpu.memory_space<vmem>>) attributes {dimension_semantics = [#tpu.dimension_semantics<parallel>], iteration_bounds = array<i64: 1>, scalar_prefetch = 0 : i64, scratch_operands = 0 : i64, tpu.core_type = #tpu.core_type<tc>, window_params = [{transform_indices = @transform_0, window_bounds = array<i64: 128, 36>}, {pipeline_mode = #tpu.pipeline_mode<synchronous>, transform_indices = @transform_1, window_bounds = array<i64: 36, 4>}, {pipeline_mode = #tpu.pipeline_mode<synchronous>, transform_indices = @transform_2, window_bounds = array<i64: 1, 4>}, {pipeline_mode = #tpu.pipeline_mode<synchronous>, transform_indices = @transform_3, window_bounds = array<i64: 4, 4>}, {transform_indices = @transform_4, window_bounds = array<i64: 128, 36>}, {pipeline_mode = #tpu.pipeline_mode<synchronous>, transform_indices = @transform_5, window_bounds = array<i64: 36, 4>}, {transform_indices = @transform_6, window_bounds = array<i64: 128, 4>}, {transform_indices = @transform_7, window_bounds = array<i64: 128, 4>}]} {
    %c0 = arith.constant 0 : index
    %c0_0 = arith.constant 0 : index
    %0 = vector.load %arg1[%c0, %c0_0] : memref<128x36xf32, #tpu.memory_space<vmem>>, vector<128x36xf32>
    %c0_1 = arith.constant 0 : index
    %c0_2 = arith.constant 0 : index
    %1 = vector.load %arg2[%c0_1, %c0_2] : memref<36x4xf32, #tpu.memory_space<vmem>>, vector<36x4xf32>
    %cst = arith.constant dense<0.000000e+00> : vector<128x4xf32>
    %2 = tpu.matmul %0, %1, %cst {dimension_numbers = #tpu.dot_dimension_numbers<[1], [0], [0], [1], [0, 0, 1, 1], [], []>} : vector<128x36xf32>, vector<36x4xf32>, vector<128x4xf32> -> vector<128x4xf32>
    %c0_3 = arith.constant 0 : index
    %c0_4 = arith.constant 0 : index
    %3 = vector.load %arg3[%c0_3, %c0_4] : memref<1x4xf32, #tpu.memory_space<vmem>>, vector<1x4xf32>
    %4 = vector.broadcast %3 : vector<1x4xf32> to vector<128x4xf32>
    %5 = arith.addf %2, %4 : vector<128x4xf32>
    %cst_5 = arith.constant 0.000000e+00 : f32
    %6 = vector.broadcast %cst_5 : f32 to vector<128x4xf32>
    %7 = arith.cmpf oge, %5, %6 : vector<128x4xf32>
    %cst_6 = arith.constant 2.000000e-01 : f32
    %8 = vector.broadcast %cst_6 : f32 to vector<128x4xf32>
    %9 = arith.mulf %8, %5 : vector<128x4xf32>
    %10 = arith.select %7, %5, %9 : vector<128x4xi1>, vector<128x4xf32>
    %c0_7 = arith.constant 0 : index
    %c0_8 = arith.constant 0 : index
    %11 = vector.load %arg4[%c0_7, %c0_8] : memref<4x4xf32, #tpu.memory_space<vmem>>, vector<4x4xf32>
    %cst_9 = arith.constant dense<0.000000e+00> : vector<128x4xf32>
    %12 = tpu.matmul %10, %11, %cst_9 {dimension_numbers = #tpu.dot_dimension_numbers<[1], [0], [0], [1], [0, 0, 1, 1], [], []>} : vector<128x4xf32>, vector<4x4xf32>, vector<128x4xf32> -> vector<128x4xf32>
    %c0_10 = arith.constant 0 : index
    %c0_11 = arith.constant 0 : index
    %13 = vector.load %arg7[%c0_10, %c0_11] : memref<128x4xf32, #tpu.memory_space<vmem>>, vector<128x4xf32>
    tpu.vector_store %arg7[%c0_10, %c0_11], %12 {strides = array<i32>} : memref<128x4xf32, #tpu.memory_space<vmem>>, vector<128x4xf32>,
    %c0_12 = arith.constant 0 : index
    %c0_13 = arith.constant 0 : index
    %14 = vector.load %arg5[%c0_12, %c0_13] : memref<128x36xf32, #tpu.memory_space<vmem>>, vector<128x36xf32>
    %c0_14 = arith.constant 0 : index
    %c0_15 = arith.constant 0 : index
    %15 = vector.load %arg6[%c0_14, %c0_15] : memref<36x4xf32, #tpu.memory_space<vmem>>, vector<36x4xf32>
    %cst_16 = arith.constant dense<0.000000e+00> : vector<128x4xf32>
    %16 = tpu.matmul %14, %15, %cst_16 {dimension_numbers = #tpu.dot_dimension_numbers<[1], [0], [0], [1], [0, 0, 1, 1], [], []>} : vector<128x36xf32>, vector<36x4xf32>, vector<128x4xf32> -> vector<128x4xf32>
    %c0_17 = arith.constant 0 : index
    %c0_18 = arith.constant 0 : index
    %17 = vector.load %arg8[%c0_17, %c0_18] : memref<128x4xf32, #tpu.memory_space<vmem>>, vector<128x4xf32>
    tpu.vector_store %arg8[%c0_17, %c0_18], %16 {strides = array<i32>} : memref<128x4xf32, #tpu.memory_space<vmem>>, vector<128x4xf32>,
    return
  }
  func.func @transform_0(%arg0: i32) -> (i32, i32) {
    %c0_i32 = arith.constant 0 : i32
    %c0_i32_0 = arith.constant 0 : i32
    return %arg0, %c0_i32 : i32, i32
  }
  func.func @transform_1(%arg0: i32) -> (i32, i32) {
    %c0_i32 = arith.constant 0 : i32
    %c0_i32_0 = arith.constant 0 : i32
    %c0_i32_1 = arith.constant 0 : i32
    return %c0_i32, %c0_i32_0 : i32, i32
  }
  func.func @transform_2(%arg0: i32) -> (i32, i32) {
    %c0_i32 = arith.constant 0 : i32
    %c0_i32_0 = arith.constant 0 : i32
    %c0_i32_1 = arith.constant 0 : i32
    return %c0_i32, %c0_i32_0 : i32, i32
  }
  func.func @transform_3(%arg0: i32) -> (i32, i32) {
    %c0_i32 = arith.constant 0 : i32
    %c0_i32_0 = arith.constant 0 : i32
    %c0_i32_1 = arith.constant 0 : i32
    return %c0_i32, %c0_i32_0 : i32, i32
  }
  func.func @transform_4(%arg0: i32) -> (i32, i32) {
    %c0_i32 = arith.constant 0 : i32
    %c0_i32_0 = arith.constant 0 : i32
    return %arg0, %c0_i32 : i32, i32
  }
  func.func @transform_5(%arg0: i32) -> (i32, i32) {
    %c0_i32 = arith.constant 0 : i32
    %c0_i32_0 = arith.constant 0 : i32
    %c0_i32_1 = arith.constant 0 : i32
    return %c0_i32, %c0_i32_0 : i32, i32
  }
  func.func @transform_6(%arg0: i32) -> (i32, i32) {
    %c0_i32 = arith.constant 0 : i32
    %c0_i32_0 = arith.constant 0 : i32
    return %arg0, %c0_i32 : i32, i32
  }
  func.func @transform_7(%arg0: i32) -> (i32, i32) {
    %c0_i32 = arith.constant 0 : i32
    %c0_i32_0 = arith.constant 0 : i32
    return %arg0, %c0_i32 : i32, i32
  }
}

</mosaic_0001>

<llo_original>
// kernel: down_block.3
$region0: #{down_block.3}
  #allocation0 [shape = 'u32[]', space=smem, size = 0x4, offset = 0x4, fixed_abs, tag = 'smem constant byte address 0x4 - core index']
  #allocation1 [shape = 'u32[144,128]{1,0:T(1,128)}', space=vmem, size = 0x12000, scoped, tag = 'internal scratch']
  %s0 = inlined_call_operand.vmem [shape: f32[128,36], index: 0, kind: input, shape index: {}]
  %s1 = inlined_call_operand.vmem [shape: f32[36,4], index: 1, kind: input, shape index: {}]
  %s2 = inlined_call_operand.vmem [shape: f32[1,4], index: 2, kind: input, shape index: {}]
  %s3 = inlined_call_operand.vmem [shape: f32[4,4], index: 3, kind: input, shape index: {}]
  %s4 = inlined_call_operand.vmem [shape: f32[128,36], index: 4, kind: input, shape index: {}]
  %s5 = inlined_call_operand.vmem [shape: f32[36,4], index: 5, kind: input, shape index: {}]
  %s6 = inlined_call_operand.vmem [shape: f32[128,4], index: 6, kind: output, shape index: {0}]
  %s7 = inlined_call_operand.vmem [shape: f32[128,4], index: 7, kind: output, shape index: {1}]
  %8 = xla_tuple %s6, %s7
  %s9 = sld [smem:[#allocation0]]
  $region42: #{down_block.3} parent=0
    _
  %s11 = ssub.s32 1, %s9
  %s12 = scalar_select 0, %s11, %s9
  // Predicated region
  $region2: #{down_block.3} parent=0 // pred_check
    _
  $region3: #{down_block.3} parent=0 // pred_check_branch
    %14 = sbr.rel (0) target = $region5
  $region4: #{down_block.3} parent=0 // pred_region
    _
  $region5: #{down_block.3} parent=0 // pred_fallthru
    _
  // Predicated region
  $region6: #{down_block.3} parent=0 // pred_check
    _
  $region7: #{down_block.3} parent=0 // pred_check_branch
    %16 = sbr.rel (0) target = $region9
  $region8: #{down_block.3} parent=0 // pred_region
    _
  $region9: #{down_block.3} parent=0 // pred_fallthru
    _
  // Predicated region
  $region10: #{down_block.3} parent=0 // pred_check
    _
  $region11: #{down_block.3} parent=0 // pred_check_branch
    %18 = sbr.rel (0) target = $region13
  $region12: #{down_block.3} parent=0 // pred_region
    _
  $region13: #{down_block.3} parent=0 // pred_fallthru
    _
  // Predicated region
  $region14: #{down_block.3} parent=0 // pred_check
    _
  $region15: #{down_block.3} parent=0 // pred_check_branch
    %20 = sbr.rel (0) target = $region17
  $region16: #{down_block.3} parent=0 // pred_region
    _
  $region17: #{down_block.3} parent=0 // pred_fallthru
    _
  // Predicated region
  $region18: #{down_block.3} parent=0 // pred_check
    _
  $region19: #{down_block.3} parent=0 // pred_check_branch
    %22 = sbr.rel (0) target = $region21
  $region20: #{down_block.3} parent=0 // pred_region
    _
  $region21: #{down_block.3} parent=0 // pred_fallthru
    _
  // Predicated region
  $region22: #{down_block.3} parent=0 // pred_check
    _
  $region23: #{down_block.3} parent=0 // pred_check_branch
    %24 = sbr.rel (0) target = $region25
  $region24: #{down_block.3} parent=0 // pred_region
    _
  $region25: #{down_block.3} parent=0 // pred_fallthru
    _
  %v25 = vld [vmem:[%s0] sm:$0xff]
  %v26 = vld [vmem:[%s0 + $0x8] sm:$0xff]
  %v27 = vld [vmem:[%s0 + $0x10] sm:$0xff]
  %v28 = vld [vmem:[%s0 + $0x18] sm:$0xff]
  %v29 = vld [vmem:[%s0 + $0x20] sm:$0xff]
  %v30 = vld [vmem:[%s0 + $0x28] sm:$0xff]
  %v31 = vld [vmem:[%s0 + $0x30] sm:$0xff]
  %v32 = vld [vmem:[%s0 + $0x38] sm:$0xff]
  %v33 = vld [vmem:[%s0 + $0x40] sm:$0xff]
  %v34 = vld [vmem:[%s0 + $0x48] sm:$0xff]
  %v35 = vld [vmem:[%s0 + $0x50] sm:$0xff]
  %v36 = vld [vmem:[%s0 + $0x58] sm:$0xff]
  %v37 = vld [vmem:[%s0 + $0x60] sm:$0xff]
  %v38 = vld [vmem:[%s0 + $0x68] sm:$0xff]
  %v39 = vld [vmem:[%s0 + $0x70] sm:$0xff]
  %v40 = vld [vmem:[%s0 + $0x78] sm:$0xff]
  %v41 = vld [vmem:[%s1] sm:$0xff]
  %v42 = vld [vmem:[%s1 + $0x8] sm:$0xff]
  %v43 = vld [vmem:[%s1 + $0x10] sm:$0xff]
  %v44 = vld [vmem:[%s1 + $0x18] sm:$0xff]
  %v45 = vld [vmem:[%s1 + $0x20] sm:$0xf]
  %v46 = vld [vmem:[%s2] sm:$0x1]
  %v48 = vlaneseq
  %v49 = vshrl.u32 %v48, 7
  %v50 = vsub.s32 0, %v49
  %v51 = vrot.slane %v46, %v50
  %vm53 = vcmask 293888
  %v55 = vsel %vm53, %v25, 0
  %v58 = vsel %vm53, %v26, 0
  %v61 = vsel %vm53, %v27, 0
  %v64 = vsel %vm53, %v28, 0
  %v67 = vsel %vm53, %v29, 0
  %v70 = vsel %vm53, %v30, 0
  %v73 = vsel %vm53, %v31, 0
  %v76 = vsel %vm53, %v32, 0
  %v79 = vsel %vm53, %v33, 0
  %v82 = vsel %vm53, %v34, 0
  %v85 = vsel %vm53, %v35, 0
  %v88 = vsel %vm53, %v36, 0
  %v91 = vsel %vm53, %v37, 0
  %v94 = vsel %vm53, %v38, 0
  %v97 = vsel %vm53, %v39, 0
  %v100 = vsel %vm53, %v40, 0
  %vm102 = vcmask 1043456
  %v104 = vsel %vm102, %v45, 0
  %106 = vmatprep.subr.mxu0 0.0
  %107 = vmatpush1.msra.mxu0 %v41
  %108 = vmatprep.subr.mxu0 0.0
  %109 = vmatpush1.msra.mxu0 %v42
  %110 = vmatprep.subr.mxu0 0.0
  %111 = vmatpush1.msra.mxu0 %v43
  %112 = vmatprep.subr.mxu0 0.0
  %113 = vmatpush1.msra.mxu0 %v44
  %114 = vmatprep.subr.mxu0 0.0
  %115 = vmatpush1.msra.mxu0 %v104
  %116 = vmatprep.subr.mxu0 0.0
  %117 = vmatpush1.msra.mxu0 0.0
  %118 = vmatprep.subr.mxu0 0.0
  %119 = vmatpush1.msra.mxu0 0.0
  %120 = vmatprep.subr.mxu0 0.0
  %121 = vmatpush1.msra.mxu0 0.0
  %122 = vmatprep.subr.mxu0 0.0
  %123 = vmatpush1.msra.mxu0 0.0
  %124 = vmatprep.subr.mxu0 0.0
  %125 = vmatpush1.msra.mxu0 0.0
  %126 = vmatprep.subr.mxu0 0.0
  %127 = vmatpush1.msra.mxu0 0.0
  %128 = vmatprep.subr.mxu0 0.0
  %129 = vmatpush1.msra.mxu0 0.0
  %130 = vmatprep.subr.mxu0 0.0
  %131 = vmatpush1.msra.mxu0 0.0
  %132 = vmatprep.subr.mxu0 0.0
  %133 = vmatpush1.msra.mxu0 0.0
  %134 = vmatprep.subr.mxu0 0.0
  %135 = vmatpush1.msra.mxu0 0.0
  %136 = vmatprep.subr.mxu0 0.0
  %137 = vmatpush1.msra.mxu0 0.0
  %138 = vmatprep.subr.mxu0 0.0
  %139 = vmatpush1.msra.mxu0 0.0
  %140 = vmatprep.subr.mxu0 0.0
  %141 = vmatpush1.msra.mxu0 0.0
  %142 = vmatprep.subr.mxu0 0.0
  %143 = vmatpush1.msra.mxu0 0.0
  %144 = vmatprep.subr.mxu0 0.0
  %145 = vmatpush1.msra.mxu0 0.0
  %146 = vmatprep.subr.mxu0 0.0
  %147 = vmatpush1.msra.mxu0 0.0
  %148 = vmatprep.subr.mxu0 0.0
  %149 = vmatpush1.msra.mxu0 0.0
  %150 = vmatprep.subr.mxu0 0.0
  %151 = vmatpush1.msra.mxu0 0.0
  %152 = vmatprep.subr.mxu0 0.0
  %153 = vmatpush1.msra.mxu0 0.0
  %154 = vmatprep.subr.mxu0 0.0
  %155 = vmatpush1.msra.mxu0 0.0
  %156 = vmatprep.subr.mxu0 0.0
  %157 = vmatpush1.msra.mxu0 0.0
  %158 = vmatprep.subr.mxu0 0.0
  %159 = vmatpush1.msra.mxu0 0.0
  %160 = vmatprep.subr.mxu0 0.0
  %161 = vmatpush1.msra.mxu0 0.0
  %162 = vmatprep.subr.mxu0 0.0
  %163 = vmatpush1.msra.mxu0 0.0
  %164 = vmatprep.subr.mxu0 0.0
  %165 = vmatpush1.msra.mxu0 0.0
  %166 = vmatprep.subr.mxu0 0.0
  %167 = vmatpush1.msra.mxu0 0.0
  %168 = vmatprep.subr.mxu0 0.0
  %169 = vmatpush1.msra.mxu0 0.0
  %170 = vmatprep.mubr.f32.mxu0 0.0
  %171 = vmatmul.mubr.f32.gmra.mrb[0].mxu0 %v55
  %v172 = vpop.f32.mrb[0].mxu0
  %v173 = vadd.f32 %v51, %v172
  %v174 = vpop.f32.mrb[0].mxu0
  %175 = vmatprep.mubr.f32.mxu0 0.0
  %176 = vmatmul.mubr.f32.gmra.mrb[0].mxu0 %v58
  %v177 = vpop.f32.mrb[0].mxu0
  %v178 = vadd.f32 %v51, %v177
  %v179 = vpop.f32.mrb[0].mxu0
  %180 = vmatprep.mubr.f32.mxu0 0.0
  %181 = vmatmul.mubr.f32.gmra.mrb[0].mxu0 %v61
  %v182 = vpop.f32.mrb[0].mxu0
  %v183 = vadd.f32 %v51, %v182
  %v184 = vpop.f32.mrb[0].mxu0
  %185 = vmatprep.mubr.f32.mxu0 0.0
  %186 = vmatmul.mubr.f32.gmra.mrb[0].mxu0 %v64
  %v187 = vpop.f32.mrb[0].mxu0
  %v188 = vadd.f32 %v51, %v187
  %v189 = vpop.f32.mrb[0].mxu0
  %190 = vmatprep.mubr.f32.mxu0 0.0
  %191 = vmatmul.mubr.f32.gmra.mrb[0].mxu0 %v67
  %v192 = vpop.f32.mrb[0].mxu0
  %v193 = vadd.f32 %v51, %v192
  %v194 = vpop.f32.mrb[0].mxu0
  %195 = vmatprep.mubr.f32.mxu0 0.0
  %196 = vmatmul.mubr.f32.gmra.mrb[0].mxu0 %v70
  %v197 = vpop.f32.mrb[0].mxu0
  %v198 = vadd.f32 %v51, %v197
  %v199 = vpop.f32.mrb[0].mxu0
  %200 = vmatprep.mubr.f32.mxu0 0.0
  %201 = vmatmul.mubr.f32.gmra.mrb[0].mxu0 %v73
  %v202 = vpop.f32.mrb[0].mxu0
  %v203 = vadd.f32 %v51, %v202
  %v204 = vpop.f32.mrb[0].mxu0
  %205 = vmatprep.mubr.f32.mxu0 0.0
  %206 = vmatmul.mubr.f32.gmra.mrb[0].mxu0 %v76
  %v207 = vpop.f32.mrb[0].mxu0
  %v208 = vadd.f32 %v51, %v207
  %v209 = vpop.f32.mrb[0].mxu0
  %210 = vmatprep.mubr.f32.mxu0 0.0
  %211 = vmatmul.mubr.f32.gmra.mrb[0].mxu0 %v79
  %v212 = vpop.f32.mrb[0].mxu0
  %v213 = vadd.f32 %v51, %v212
  %v214 = vpop.f32.mrb[0].mxu0
  %215 = vmatprep.mubr.f32.mxu0 0.0
  %216 = vmatmul.mubr.f32.gmra.mrb[0].mxu0 %v82
  %v217 = vpop.f32.mrb[0].mxu0
  %v218 = vadd.f32 %v51, %v217
  %v219 = vpop.f32.mrb[0].mxu0
  %220 = vmatprep.mubr.f32.mxu0 0.0
  %221 = vmatmul.mubr.f32.gmra.mrb[0].mxu0 %v85
  %v222 = vpop.f32.mrb[0].mxu0
  %v223 = vadd.f32 %v51, %v222
  %v224 = vpop.f32.mrb[0].mxu0
  %225 = vmatprep.mubr.f32.mxu0 0.0
  %226 = vmatmul.mubr.f32.gmra.mrb[0].mxu0 %v88
  %v227 = vpop.f32.mrb[0].mxu0
  %v228 = vadd.f32 %v51, %v227
  %v229 = vpop.f32.mrb[0].mxu0
  %230 = vmatprep.mubr.f32.mxu0 0.0
  %231 = vmatmul.mubr.f32.gmra.mrb[0].mxu0 %v91
  %v232 = vpop.f32.mrb[0].mxu0
  %v233 = vadd.f32 %v51, %v232
  %v234 = vpop.f32.mrb[0].mxu0
  %235 = vmatprep.mubr.f32.mxu0 0.0
  %236 = vmatmul.mubr.f32.gmra.mrb[0].mxu0 %v94
  %v237 = vpop.f32.mrb[0].mxu0
  %v238 = vadd.f32 %v51, %v237
  %v239 = vpop.f32.mrb[0].mxu0
  %240 = vmatprep.mubr.f32.mxu0 0.0
  %241 = vmatmul.mubr.f32.gmra.mrb[0].mxu0 %v97
  %v242 = vpop.f32.mrb[0].mxu0
  %v243 = vadd.f32 %v51, %v242
  %v244 = vpop.f32.mrb[0].mxu0
  %245 = vmatprep.mubr.f32.mxu0 0.0
  %246 = vmatmul.mubr.f32.gmra.mrb[0].mxu0 %v100
  %v247 = vpop.f32.mrb[0].mxu0
  %v248 = vadd.f32 %v51, %v247
  %v249 = vpop.f32.mrb[0].mxu0
  %250 = vdwg.mxu0
  %vm251 = vcmp.ge.f32.partialorder %v173, 0.0
  %vm252 = vcmp.ge.f32.partialorder %v178, 0.0
  %vm253 = vcmp.ge.f32.partialorder %v183, 0.0
  %vm254 = vcmp.ge.f32.partialorder %v188, 0.0
  %vm255 = vcmp.ge.f32.partialorder %v193, 0.0
  %vm256 = vcmp.ge.f32.partialorder %v198, 0.0
  %vm257 = vcmp.ge.f32.partialorder %v203, 0.0
  %vm258 = vcmp.ge.f32.partialorder %v208, 0.0
  %vm259 = vcmp.ge.f32.partialorder %v213, 0.0
  %vm260 = vcmp.ge.f32.partialorder %v218, 0.0
  %vm261 = vcmp.ge.f32.partialorder %v223, 0.0
  %vm262 = vcmp.ge.f32.partialorder %v228, 0.0
  %vm263 = vcmp.ge.f32.partialorder %v233, 0.0
  %vm264 = vcmp.ge.f32.partialorder %v238, 0.0
  %vm265 = vcmp.ge.f32.partialorder %v243, 0.0
  %vm266 = vcmp.ge.f32.partialorder %v248, 0.0
  %v267 = vmul.f32 %v173, 0.2
  %v268 = vmul.f32 %v178, 0.2
  %v269 = vmul.f32 %v183, 0.2
  %v270 = vmul.f32 %v188, 0.2
  %v271 = vmul.f32 %v193, 0.2
  %v272 = vmul.f32 %v198, 0.2
  %v273 = vmul.f32 %v203, 0.2
  %v274 = vmul.f32 %v208, 0.2
  %v275 = vmul.f32 %v213, 0.2
  %v276 = vmul.f32 %v218, 0.2
  %v277 = vmul.f32 %v223, 0.2
  %v278 = vmul.f32 %v228, 0.2
  %v279 = vmul.f32 %v233, 0.2
  %v280 = vmul.f32 %v238, 0.2
  %v281 = vmul.f32 %v243, 0.2
  %v282 = vmul.f32 %v248, 0.2
  %v283 = vsel %vm251, %v173, %v267
  %v284 = vsel %vm252, %v178, %v268
  %v285 = vsel %vm253, %v183, %v269
  %v286 = vsel %vm254, %v188, %v270
  %v287 = vsel %vm255, %v193, %v271
  %v288 = vsel %vm256, %v198, %v272
  %v289 = vsel %vm257, %v203, %v273
  %v290 = vsel %vm258, %v208, %v274
  %v291 = vsel %vm259, %v213, %v275
  %v292 = vsel %vm260, %v218, %v276
  %v293 = vsel %vm261, %v223, %v277
  %v294 = vsel %vm262, %v228, %v278
  %v295 = vsel %vm263, %v233, %v279
  %v296 = vsel %vm264, %v238, %v280
  %v297 = vsel %vm265, %v243, %v281
  %v298 = vsel %vm266, %v248, %v282
  %v299 = vld [vmem:[%s3] sm:$0xf]
  %vm300 = vcmask 31744
  %v302 = vsel %vm300, %v283, 0
  %v305 = vsel %vm300, %v284, 0
  %v308 = vsel %vm300, %v285, 0
  %v311 = vsel %vm300, %v286, 0
  %v314 = vsel %vm300, %v287, 0
  %v317 = vsel %vm300, %v288, 0
  %v320 = vsel %vm300, %v289, 0
  %v323 = vsel %vm300, %v290, 0
  %v326 = vsel %vm300, %v291, 0
  %v329 = vsel %vm300, %v292, 0
  %v332 = vsel %vm300, %v293, 0
  %v335 = vsel %vm300, %v294, 0
  %v338 = vsel %vm300, %v295, 0
  %v341 = vsel %vm300, %v296, 0
  %v344 = vsel %vm300, %v297, 0
  %v347 = vsel %vm300, %v298, 0
  %v350 = vsel %vm102, %v299, 0
  %352 = vmatprep.subr.mxu0 0.0
  %353 = vmatpush1.msra.mxu0 %v350
  %354 = vmatprep.subr.mxu0 0.0
  %355 = vmatpush1.msra.mxu0 0.0
  %356 = vmatprep.subr.mxu0 0.0
  %357 = vmatpush1.msra.mxu0 0.0
  %358 = vmatprep.subr.mxu0 0.0
  %359 = vmatpush1.msra.mxu0 0.0
  %360 = vmatprep.subr.mxu0 0.0
  %361 = vmatpush1.msra.mxu0 0.0
  %362 = vmatprep.subr.mxu0 0.0
  %363 = vmatpush1.msra.mxu0 0.0
  %364 = vmatprep.subr.mxu0 0.0
  %365 = vmatpush1.msra.mxu0 0.0
  %366 = vmatprep.subr.mxu0 0.0
  %367 = vmatpush1.msra.mxu0 0.0
  %368 = vmatprep.subr.mxu0 0.0
  %369 = vmatpush1.msra.mxu0 0.0
  %370 = vmatprep.subr.mxu0 0.0
  %371 = vmatpush1.msra.mxu0 0.0
  %372 = vmatprep.subr.mxu0 0.0
  %373 = vmatpush1.msra.mxu0 0.0
  %374 = vmatprep.subr.mxu0 0.0
  %375 = vmatpush1.msra.mxu0 0.0
  %376 = vmatprep.subr.mxu0 0.0
  %377 = vmatpush1.msra.mxu0 0.0
  %378 = vmatprep.subr.mxu0 0.0
  %379 = vmatpush1.msra.mxu0 0.0
  %380 = vmatprep.subr.mxu0 0.0
  %381 = vmatpush1.msra.mxu0 0.0
  %382 = vmatprep.subr.mxu0 0.0
  %383 = vmatpush1.msra.mxu0 0.0
  %384 = vmatprep.subr.mxu0 0.0
  %385 = vmatpush1.msra.mxu0 0.0
  %386 = vmatprep.subr.mxu0 0.0
  %387 = vmatpush1.msra.mxu0 0.0
  %388 = vmatprep.subr.mxu0 0.0
  %389 = vmatpush1.msra.mxu0 0.0
  %390 = vmatprep.subr.mxu0 0.0
  %391 = vmatpush1.msra.mxu0 0.0
  %392 = vmatprep.subr.mxu0 0.0
  %393 = vmatpush1.msra.mxu0 0.0
  %394 = vmatprep.subr.mxu0 0.0
  %395 = vmatpush1.msra.mxu0 0.0
  %396 = vmatprep.subr.mxu0 0.0
  %397 = vmatpush1.msra.mxu0 0.0
  %398 = vmatprep.subr.mxu0 0.0
  %399 = vmatpush1.msra.mxu0 0.0
  %400 = vmatprep.subr.mxu0 0.0
  %401 = vmatpush1.msra.mxu0 0.0
  %402 = vmatprep.subr.mxu0 0.0
  %403 = vmatpush1.msra.mxu0 0.0
  %404 = vmatprep.subr.mxu0 0.0
  %405 = vmatpush1.msra.mxu0 0.0
  %406 = vmatprep.subr.mxu0 0.0
  %407 = vmatpush1.msra.mxu0 0.0
  %408 = vmatprep.subr.mxu0 0.0
  %409 = vmatpush1.msra.mxu0 0.0
  %410 = vmatprep.subr.mxu0 0.0
  %411 = vmatpush1.msra.mxu0 0.0
  %412 = vmatprep.subr.mxu0 0.0
  %413 = vmatpush1.msra.mxu0 0.0
  %414 = vmatprep.subr.mxu0 0.0
  %415 = vmatpush1.msra.mxu0 0.0
  %416 = vmatprep.mubr.f32.mxu0 0.0
  %417 = vmatmul.mubr.f32.gmra.mrb[0].mxu0 %v302
  %v418 = vpop.f32.mrb[0].mxu0
  %v419 = vadd.f32 0.0, %v418
  %v420 = vpop.f32.mrb[0].mxu0
  %421 = vmatprep.mubr.f32.mxu0 0.0
  %422 = vmatmul.mubr.f32.gmra.mrb[0].mxu0 %v305
  %v423 = vpop.f32.mrb[0].mxu0
  %v424 = vadd.f32 0.0, %v423
  %v425 = vpop.f32.mrb[0].mxu0
  %426 = vmatprep.mubr.f32.mxu0 0.0
  %427 = vmatmul.mubr.f32.gmra.mrb[0].mxu0 %v308
  %v428 = vpop.f32.mrb[0].mxu0
  %v429 = vadd.f32 0.0, %v428
  %v430 = vpop.f32.mrb[0].mxu0
  %431 = vmatprep.mubr.f32.mxu0 0.0
  %432 = vmatmul.mubr.f32.gmra.mrb[0].mxu0 %v311
  %v433 = vpop.f32.mrb[0].mxu0
  %v434 = vadd.f32 0.0, %v433
  %v435 = vpop.f32.mrb[0].mxu0
  %436 = vmatprep.mubr.f32.mxu0 0.0
  %437 = vmatmul.mubr.f32.gmra.mrb[0].mxu0 %v314
  %v438 = vpop.f32.mrb[0].mxu0
  %v439 = vadd.f32 0.0, %v438
  %v440 = vpop.f32.mrb[0].mxu0
  %441 = vmatprep.mubr.f32.mxu0 0.0
  %442 = vmatmul.mubr.f32.gmra.mrb[0].mxu0 %v317
  %v443 = vpop.f32.mrb[0].mxu0
  %v444 = vadd.f32 0.0, %v443
  %v445 = vpop.f32.mrb[0].mxu0
  %446 = vmatprep.mubr.f32.mxu0 0.0
  %447 = vmatmul.mubr.f32.gmra.mrb[0].mxu0 %v320
  %v448 = vpop.f32.mrb[0].mxu0
  %v449 = vadd.f32 0.0, %v448
  %v450 = vpop.f32.mrb[0].mxu0
  %451 = vmatprep.mubr.f32.mxu0 0.0
  %452 = vmatmul.mubr.f32.gmra.mrb[0].mxu0 %v323
  %v453 = vpop.f32.mrb[0].mxu0
  %v454 = vadd.f32 0.0, %v453
  %v455 = vpop.f32.mrb[0].mxu0
  %456 = vmatprep.mubr.f32.mxu0 0.0
  %457 = vmatmul.mubr.f32.gmra.mrb[0].mxu0 %v326
  %v458 = vpop.f32.mrb[0].mxu0
  %v459 = vadd.f32 0.0, %v458
  %v460 = vpop.f32.mrb[0].mxu0
  %461 = vmatprep.mubr.f32.mxu0 0.0
  %462 = vmatmul.mubr.f32.gmra.mrb[0].mxu0 %v329
  %v463 = vpop.f32.mrb[0].mxu0
  %v464 = vadd.f32 0.0, %v463
  %v465 = vpop.f32.mrb[0].mxu0
  %466 = vmatprep.mubr.f32.mxu0 0.0
  %467 = vmatmul.mubr.f32.gmra.mrb[0].mxu0 %v332
  %v468 = vpop.f32.mrb[0].mxu0
  %v469 = vadd.f32 0.0, %v468
  %v470 = vpop.f32.mrb[0].mxu0
  %471 = vmatprep.mubr.f32.mxu0 0.0
  %472 = vmatmul.mubr.f32.gmra.mrb[0].mxu0 %v335
  %v473 = vpop.f32.mrb[0].mxu0
  %v474 = vadd.f32 0.0, %v473
  %v475 = vpop.f32.mrb[0].mxu0
  %476 = vmatprep.mubr.f32.mxu0 0.0
  %477 = vmatmul.mubr.f32.gmra.mrb[0].mxu0 %v338
  %v478 = vpop.f32.mrb[0].mxu0
  %v479 = vadd.f32 0.0, %v478
  %v480 = vpop.f32.mrb[0].mxu0
  %481 = vmatprep.mubr.f32.mxu0 0.0
  %482 = vmatmul.mubr.f32.gmra.mrb[0].mxu0 %v341
  %v483 = vpop.f32.mrb[0].mxu0
  %v484 = vadd.f32 0.0, %v483
  %v485 = vpop.f32.mrb[0].mxu0
  %486 = vmatprep.mubr.f32.mxu0 0.0
  %487 = vmatmul.mubr.f32.gmra.mrb[0].mxu0 %v344
  %v488 = vpop.f32.mrb[0].mxu0
  %v489 = vadd.f32 0.0, %v488
  %v490 = vpop.f32.mrb[0].mxu0
  %491 = vmatprep.mubr.f32.mxu0 0.0
  %492 = vmatmul.mubr.f32.gmra.mrb[0].mxu0 %v347
  %v493 = vpop.f32.mrb[0].mxu0
  %v494 = vadd.f32 0.0, %v493
  %v495 = vpop.f32.mrb[0].mxu0
  %496 = vdwg.mxu0
  %497 = vst.msk [vmem:[%s6] sm:$0xff] %vm300, %v419
  %498 = vst.msk [vmem:[%s6 + $0x8] sm:$0xff] %vm300, %v424
  %499 = vst.msk [vmem:[%s6 + $0x10] sm:$0xff] %vm300, %v429
  %500 = vst.msk [vmem:[%s6 + $0x18] sm:$0xff] %vm300, %v434
  %501 = vst.msk [vmem:[%s6 + $0x20] sm:$0xff] %vm300, %v439
  %502 = vst.msk [vmem:[%s6 + $0x28] sm:$0xff] %vm300, %v444
  %503 = vst.msk [vmem:[%s6 + $0x30] sm:$0xff] %vm300, %v449
  %504 = vst.msk [vmem:[%s6 + $0x38] sm:$0xff] %vm300, %v454
  %505 = vst.msk [vmem:[%s6 + $0x40] sm:$0xff] %vm300, %v459
  %506 = vst.msk [vmem:[%s6 + $0x48] sm:$0xff] %vm300, %v464
  %507 = vst.msk [vmem:[%s6 + $0x50] sm:$0xff] %vm300, %v469
  %508 = vst.msk [vmem:[%s6 + $0x58] sm:$0xff] %vm300, %v474
  %509 = vst.msk [vmem:[%s6 + $0x60] sm:$0xff] %vm300, %v479
  %510 = vst.msk [vmem:[%s6 + $0x68] sm:$0xff] %vm300, %v484
  %511 = vst.msk [vmem:[%s6 + $0x70] sm:$0xff] %vm300, %v489
  %512 = vst.msk [vmem:[%s6 + $0x78] sm:$0xff] %vm300, %v494
  %v513 = vld [vmem:[%s4] sm:$0xff]
  %v514 = vld [vmem:[%s4 + $0x8] sm:$0xff]
  %v515 = vld [vmem:[%s4 + $0x10] sm:$0xff]
  %v516 = vld [vmem:[%s4 + $0x18] sm:$0xff]
  %v517 = vld [vmem:[%s4 + $0x20] sm:$0xff]
  %v518 = vld [vmem:[%s4 + $0x28] sm:$0xff]
  %v519 = vld [vmem:[%s4 + $0x30] sm:$0xff]
  %v520 = vld [vmem:[%s4 + $0x38] sm:$0xff]
  %v521 = vld [vmem:[%s4 + $0x40] sm:$0xff]
  %v522 = vld [vmem:[%s4 + $0x48] sm:$0xff]
  %v523 = vld [vmem:[%s4 + $0x50] sm:$0xff]
  %v524 = vld [vmem:[%s4 + $0x58] sm:$0xff]
  %v525 = vld [vmem:[%s4 + $0x60] sm:$0xff]
  %v526 = vld [vmem:[%s4 + $0x68] sm:$0xff]
  %v527 = vld [vmem:[%s4 + $0x70] sm:$0xff]
  %v528 = vld [vmem:[%s4 + $0x78] sm:$0xff]
  %v529 = vld [vmem:[%s5] sm:$0xff]
  %v530 = vld [vmem:[%s5 + $0x8] sm:$0xff]
  %v531 = vld [vmem:[%s5 + $0x10] sm:$0xff]
  %v532 = vld [vmem:[%s5 + $0x18] sm:$0xff]
  %v533 = vld [vmem:[%s5 + $0x20] sm:$0xf]
  %v535 = vsel %vm53, %v513, 0
  %v538 = vsel %vm53, %v514, 0
  %v541 = vsel %vm53, %v515, 0
  %v544 = vsel %vm53, %v516, 0
  %v547 = vsel %vm53, %v517, 0
  %v550 = vsel %vm53, %v518, 0
  %v553 = vsel %vm53, %v519, 0
  %v556 = vsel %vm53, %v520, 0
  %v559 = vsel %vm53, %v521, 0
  %v562 = vsel %vm53, %v522, 0
  %v565 = vsel %vm53, %v523, 0
  %v568 = vsel %vm53, %v524, 0
  %v571 = vsel %vm53, %v525, 0
  %v574 = vsel %vm53, %v526, 0
  %v577 = vsel %vm53, %v527, 0
  %v580 = vsel %vm53, %v528, 0
  %v583 = vsel %vm102, %v533, 0
  %585 = vmatprep.subr.mxu0 0.0
  %586 = vmatpush1.msra.mxu0 %v529
  %587 = vmatprep.subr.mxu0 0.0
  %588 = vmatpush1.msra.mxu0 %v530
  %589 = vmatprep.subr.mxu0 0.0
  %590 = vmatpush1.msra.mxu0 %v531
  %591 = vmatprep.subr.mxu0 0.0
  %592 = vmatpush1.msra.mxu0 %v532
  %593 = vmatprep.subr.mxu0 0.0
  %594 = vmatpush1.msra.mxu0 %v583
  %595 = vmatprep.subr.mxu0 0.0
  %596 = vmatpush1.msra.mxu0 0.0
  %597 = vmatprep.subr.mxu0 0.0
  %598 = vmatpush1.msra.mxu0 0.0
  %599 = vmatprep.subr.mxu0 0.0
  %600 = vmatpush1.msra.mxu0 0.0
  %601 = vmatprep.subr.mxu0 0.0
  %602 = vmatpush1.msra.mxu0 0.0
  %603 = vmatprep.subr.mxu0 0.0
  %604 = vmatpush1.msra.mxu0 0.0
  %605 = vmatprep.subr.mxu0 0.0
  %606 = vmatpush1.msra.mxu0 0.0
  %607 = vmatprep.subr.mxu0 0.0
  %608 = vmatpush1.msra.mxu0 0.0
  %609 = vmatprep.subr.mxu0 0.0
  %610 = vmatpush1.msra.mxu0 0.0
  %611 = vmatprep.subr.mxu0 0.0
  %612 = vmatpush1.msra.mxu0 0.0
  %613 = vmatprep.subr.mxu0 0.0
  %614 = vmatpush1.msra.mxu0 0.0
  %615 = vmatprep.subr.mxu0 0.0
  %616 = vmatpush1.msra.mxu0 0.0
  %617 = vmatprep.subr.mxu0 0.0
  %618 = vmatpush1.msra.mxu0 0.0
  %619 = vmatprep.subr.mxu0 0.0
  %620 = vmatpush1.msra.mxu0 0.0
  %621 = vmatprep.subr.mxu0 0.0
  %622 = vmatpush1.msra.mxu0 0.0
  %623 = vmatprep.subr.mxu0 0.0
  %624 = vmatpush1.msra.mxu0 0.0
  %625 = vmatprep.subr.mxu0 0.0
  %626 = vmatpush1.msra.mxu0 0.0
  %627 = vmatprep.subr.mxu0 0.0
  %628 = vmatpush1.msra.mxu0 0.0
  %629 = vmatprep.subr.mxu0 0.0
  %630 = vmatpush1.msra.mxu0 0.0
  %631 = vmatprep.subr.mxu0 0.0
  %632 = vmatpush1.msra.mxu0 0.0
  %633 = vmatprep.subr.mxu0 0.0
  %634 = vmatpush1.msra.mxu0 0.0
  %635 = vmatprep.subr.mxu0 0.0
  %636 = vmatpush1.msra.mxu0 0.0
  %637 = vmatprep.subr.mxu0 0.0
  %638 = vmatpush1.msra.mxu0 0.0
  %639 = vmatprep.subr.mxu0 0.0
  %640 = vmatpush1.msra.mxu0 0.0
  %641 = vmatprep.subr.mxu0 0.0
  %642 = vmatpush1.msra.mxu0 0.0
  %643 = vmatprep.subr.mxu0 0.0
  %644 = vmatpush1.msra.mxu0 0.0
  %645 = vmatprep.subr.mxu0 0.0
  %646 = vmatpush1.msra.mxu0 0.0
  %647 = vmatprep.subr.mxu0 0.0
  %648 = vmatpush1.msra.mxu0 0.0
  %649 = vmatprep.mubr.f32.mxu0 0.0
  %650 = vmatmul.mubr.f32.gmra.mrb[0].mxu0 %v535
  %v651 = vpop.f32.mrb[0].mxu0
  %v652 = vadd.f32 0.0, %v651
  %v653 = vpop.f32.mrb[0].mxu0
  %654 = vmatprep.mubr.f32.mxu0 0.0
  %655 = vmatmul.mubr.f32.gmra.mrb[0].mxu0 %v538
  %v656 = vpop.f32.mrb[0].mxu0
  %v657 = vadd.f32 0.0, %v656
  %v658 = vpop.f32.mrb[0].mxu0
  %659 = vmatprep.mubr.f32.mxu0 0.0
  %660 = vmatmul.mubr.f32.gmra.mrb[0].mxu0 %v541
  %v661 = vpop.f32.mrb[0].mxu0
  %v662 = vadd.f32 0.0, %v661
  %v663 = vpop.f32.mrb[0].mxu0
  %664 = vmatprep.mubr.f32.mxu0 0.0
  %665 = vmatmul.mubr.f32.gmra.mrb[0].mxu0 %v544
  %v666 = vpop.f32.mrb[0].mxu0
  %v667 = vadd.f32 0.0, %v666
  %v668 = vpop.f32.mrb[0].mxu0
  %669 = vmatprep.mubr.f32.mxu0 0.0
  %670 = vmatmul.mubr.f32.gmra.mrb[0].mxu0 %v547
  %v671 = vpop.f32.mrb[0].mxu0
  %v672 = vadd.f32 0.0, %v671
  %v673 = vpop.f32.mrb[0].mxu0
  %674 = vmatprep.mubr.f32.mxu0 0.0
  %675 = vmatmul.mubr.f32.gmra.mrb[0].mxu0 %v550
  %v676 = vpop.f32.mrb[0].mxu0
  %v677 = vadd.f32 0.0, %v676
  %v678 = vpop.f32.mrb[0].mxu0
  %679 = vmatprep.mubr.f32.mxu0 0.0
  %680 = vmatmul.mubr.f32.gmra.mrb[0].mxu0 %v553
  %v681 = vpop.f32.mrb[0].mxu0
  %v682 = vadd.f32 0.0, %v681
  %v683 = vpop.f32.mrb[0].mxu0
  %684 = vmatprep.mubr.f32.mxu0 0.0
  %685 = vmatmul.mubr.f32.gmra.mrb[0].mxu0 %v556
  %v686 = vpop.f32.mrb[0].mxu0
  %v687 = vadd.f32 0.0, %v686
  %v688 = vpop.f32.mrb[0].mxu0
  %689 = vmatprep.mubr.f32.mxu0 0.0
  %690 = vmatmul.mubr.f32.gmra.mrb[0].mxu0 %v559
  %v691 = vpop.f32.mrb[0].mxu0
  %v692 = vadd.f32 0.0, %v691
  %v693 = vpop.f32.mrb[0].mxu0
  %694 = vmatprep.mubr.f32.mxu0 0.0
  %695 = vmatmul.mubr.f32.gmra.mrb[0].mxu0 %v562
  %v696 = vpop.f32.mrb[0].mxu0
  %v697 = vadd.f32 0.0, %v696
  %v698 = vpop.f32.mrb[0].mxu0
  %699 = vmatprep.mubr.f32.mxu0 0.0
  %700 = vmatmul.mubr.f32.gmra.mrb[0].mxu0 %v565
  %v701 = vpop.f32.mrb[0].mxu0
  %v702 = vadd.f32 0.0, %v701
  %v703 = vpop.f32.mrb[0].mxu0
  %704 = vmatprep.mubr.f32.mxu0 0.0
  %705 = vmatmul.mubr.f32.gmra.mrb[0].mxu0 %v568
  %v706 = vpop.f32.mrb[0].mxu0
  %v707 = vadd.f32 0.0, %v706
  %v708 = vpop.f32.mrb[0].mxu0
  %709 = vmatprep.mubr.f32.mxu0 0.0
  %710 = vmatmul.mubr.f32.gmra.mrb[0].mxu0 %v571
  %v711 = vpop.f32.mrb[0].mxu0
  %v712 = vadd.f32 0.0, %v711
  %v713 = vpop.f32.mrb[0].mxu0
  %714 = vmatprep.mubr.f32.mxu0 0.0
  %715 = vmatmul.mubr.f32.gmra.mrb[0].mxu0 %v574
  %v716 = vpop.f32.mrb[0].mxu0
  %v717 = vadd.f32 0.0, %v716
  %v718 = vpop.f32.mrb[0].mxu0
  %719 = vmatprep.mubr.f32.mxu0 0.0
  %720 = vmatmul.mubr.f32.gmra.mrb[0].mxu0 %v577
  %v721 = vpop.f32.mrb[0].mxu0
  %v722 = vadd.f32 0.0, %v721
  %v723 = vpop.f32.mrb[0].mxu0
  %724 = vmatprep.mubr.f32.mxu0 0.0
  %725 = vmatmul.mubr.f32.gmra.mrb[0].mxu0 %v580
  %v726 = vpop.f32.mrb[0].mxu0
  %v727 = vadd.f32 0.0, %v726
  %v728 = vpop.f32.mrb[0].mxu0
  %729 = vdwg.mxu0
  %730 = vst.msk [vmem:[%s7] sm:$0xff] %vm300, %v652
  %731 = vst.msk [vmem:[%s7 + $0x8] sm:$0xff] %vm300, %v657
  %732 = vst.msk [vmem:[%s7 + $0x10] sm:$0xff] %vm300, %v662
  %733 = vst.msk [vmem:[%s7 + $0x18] sm:$0xff] %vm300, %v667
  %734 = vst.msk [vmem:[%s7 + $0x20] sm:$0xff] %vm300, %v672
  %735 = vst.msk [vmem:[%s7 + $0x28] sm:$0xff] %vm300, %v677
  %736 = vst.msk [vmem:[%s7 + $0x30] sm:$0xff] %vm300, %v682
  %737 = vst.msk [vmem:[%s7 + $0x38] sm:$0xff] %vm300, %v687
  %738 = vst.msk [vmem:[%s7 + $0x40] sm:$0xff] %vm300, %v692
  %739 = vst.msk [vmem:[%s7 + $0x48] sm:$0xff] %vm300, %v697
  %740 = vst.msk [vmem:[%s7 + $0x50] sm:$0xff] %vm300, %v702
  %741 = vst.msk [vmem:[%s7 + $0x58] sm:$0xff] %vm300, %v707
  %742 = vst.msk [vmem:[%s7 + $0x60] sm:$0xff] %vm300, %v712
  %743 = vst.msk [vmem:[%s7 + $0x68] sm:$0xff] %vm300, %v717
  %744 = vst.msk [vmem:[%s7 + $0x70] sm:$0xff] %vm300, %v722
  %745 = vst.msk [vmem:[%s7 + $0x78] sm:$0xff] %vm300, %v727
  // Predicated region
  $region26: #{down_block.3} parent=0 // pred_check
    _
  $region27: #{down_block.3} parent=0 // pred_check_branch
    %747 = sbr.rel (0) target = $region29
  $region28: #{down_block.3} parent=0 // pred_region
    _
  $region29: #{down_block.3} parent=0 // pred_fallthru
    _
  // Predicated region
  $region30: #{down_block.3} parent=0 // pred_check
    _
  $region31: #{down_block.3} parent=0 // pred_check_branch
    %749 = sbr.rel (0) target = $region33
  $region32: #{down_block.3} parent=0 // pred_region
    _
  $region33: #{down_block.3} parent=0 // pred_fallthru
    _
  // Predicated region
  $region34: #{down_block.3} parent=0 // pred_check
    _
  $region35: #{down_block.3} parent=0 // pred_check_branch
    %751 = sbr.rel (0) target = $region37
  $region36: #{down_block.3} parent=0 // pred_region
    _
  $region37: #{down_block.3} parent=0 // pred_fallthru
    _
  // Predicated region
  $region38: #{down_block.3} parent=0 // pred_check
    _
  $region39: #{down_block.3} parent=0 // pred_check_branch
    %753 = sbr.rel (0) target = $region41
  $region40: #{down_block.3} parent=0 // pred_region
    _
  $region41: #{down_block.3} parent=0 // pred_fallthru
    _

// kernel: down_block.2
$region0: #{down_block.2}
  #allocation0 [shape = 'u32[]', space=smem, size = 0x4, offset = 0x4, fixed_abs, tag = 'smem constant byte address 0x4 - core index']
  #allocation1 [shape = 'u32[144,128]{1,0:T(1,128)}', space=vmem, size = 0x12000, scoped, tag = 'internal scratch']
  %s0 = inlined_call_operand.vmem [shape: f32[512,4], index: 0, kind: input, shape index: {}]
  %s1 = inlined_call_operand.vmem [shape: f32[1,4], index: 1, kind: input, shape index: {}]
  %s2 = inlined_call_operand.vmem [shape: f32[1,4], index: 2, kind: input, shape index: {}]
  %s3 = inlined_call_operand.vmem [shape: f32[1,4], index: 3, kind: input, shape index: {}]
  %s4 = inlined_call_operand.vmem [shape: f32[1,4], index: 4, kind: input, shape index: {}]
  %s5 = inlined_call_operand.vmem [shape: f32[4,4], index: 5, kind: input, shape index: {}]
  %s6 = inlined_call_operand.vmem [shape: f32[1,4], index: 6, kind: input, shape index: {}]
  %s7 = inlined_call_operand.vmem [shape: f32[512,4], index: 7, kind: output, shape index: {0}]
  %s8 = inlined_call_operand.vmem [shape: f32[512,4], index: 8, kind: output, shape index: {1}]
  %9 = xla_tuple %s7, %s8
  %s10 = sld [smem:[#allocation0]]
  $region46: #{down_block.2} parent=0
    _
  %s12 = ssub.s32 1, %s10
  %s13 = scalar_select 0, %s12, %s10
  // Predicated region
  $region2: #{down_block.2} parent=0 // pred_check
    _
  $region3: #{down_block.2} parent=0 // pred_check_branch
    %15 = sbr.rel (0) target = $region5
  $region4: #{down_block.2} parent=0 // pred_region
    _
  $region5: #{down_block.2} parent=0 // pred_fallthru
    _
  // Predicated region
  $region6: #{down_block.2} parent=0 // pred_check
    _
  $region7: #{down_block.2} parent=0 // pred_check_branch
    %17 = sbr.rel (0) target = $region9
  $region8: #{down_block.2} parent=0 // pred_region
    _
  $region9: #{down_block.2} parent=0 // pred_fallthru
    _
  // Predicated region
  $region10: #{down_block.2} parent=0 // pred_check
    _
  $region11: #{down_block.2} parent=0 // pred_check_branch
    %19 = sbr.rel (0) target = $region13
  $region12: #{down_block.2} parent=0 // pred_region
    _
  $region13: #{down_block.2} parent=0 // pred_fallthru
    _
  // Predicated region
  $region14: #{down_block.2} parent=0 // pred_check
    _
  $region15: #{down_block.2} parent=0 // pred_check_branch
    %21 = sbr.rel (0) target = $region17
  $region16: #{down_block.2} parent=0 // pred_region
    _
  $region17: #{down_block.2} parent=0 // pred_fallthru
    _
  // Predicated region
  $region18: #{down_block.2} parent=0 // pred_check
    _
  $region19: #{down_block.2} parent=0 // pred_check_branch
    %23 = sbr.rel (0) target = $region21
  $region20: #{down_block.2} parent=0 // pred_region
    _
  $region21: #{down_block.2} parent=0 // pred_fallthru
    _
  // Predicated region
  $region22: #{down_block.2} parent=0 // pred_check
    _
  $region23: #{down_block.2} parent=0 // pred_check_branch
    %25 = sbr.rel (0) target = $region25
  $region24: #{down_block.2} parent=0 // pred_region
    _
  $region25: #{down_block.2} parent=0 // pred_fallthru
    _
  // Predicated region
  $region26: #{down_block.2} parent=0 // pred_check
    _
  $region27: #{down_block.2} parent=0 // pred_check_branch
    %27 = sbr.rel (0) target = $region29
  $region28: #{down_block.2} parent=0 // pred_region
    _
  $region29: #{down_block.2} parent=0 // pred_fallthru
    _
  %v28 = vld [vmem:[%s0] sm:$0xff]
  %v29 = vld [vmem:[%s0 + $0x8] sm:$0xff]
  %v30 = vld [vmem:[%s0 + $0x10] sm:$0xff]
  %v31 = vld [vmem:[%s0 + $0x18] sm:$0xff]
  %v32 = vld [vmem:[%s0 + $0x20] sm:$0xff]
  %v33 = vld [vmem:[%s0 + $0x28] sm:$0xff]
  %v34 = vld [vmem:[%s0 + $0x30] sm:$0xff]
  %v35 = vld [vmem:[%s0 + $0x38] sm:$0xff]
  %v36 = vld [vmem:[%s0 + $0x40] sm:$0xff]
  %v37 = vld [vmem:[%s0 + $0x48] sm:$0xff]
  %v38 = vld [vmem:[%s0 + $0x50] sm:$0xff]
  %v39 = vld [vmem:[%s0 + $0x58] sm:$0xff]
  %v40 = vld [vmem:[%s0 + $0x60] sm:$0xff]
  %v41 = vld [vmem:[%s0 + $0x68] sm:$0xff]
  %v42 = vld [vmem:[%s0 + $0x70] sm:$0xff]
  %v43 = vld [vmem:[%s0 + $0x78] sm:$0xff]
  %v44 = vld [vmem:[%s0 + $0x80] sm:$0xff]
  %v45 = vld [vmem:[%s0 + $0x88] sm:$0xff]
  %v46 = vld [vmem:[%s0 + $0x90] sm:$0xff]
  %v47 = vld [vmem:[%s0 + $0x98] sm:$0xff]
  %v48 = vld [vmem:[%s0 + $0xa0] sm:$0xff]
  %v49 = vld [vmem:[%s0 + $0xa8] sm:$0xff]
  %v50 = vld [vmem:[%s0 + $0xb0] sm:$0xff]
  %v51 = vld [vmem:[%s0 + $0xb8] sm:$0xff]
  %v52 = vld [vmem:[%s0 + $0xc0] sm:$0xff]
  %v53 = vld [vmem:[%s0 + $0xc8] sm:$0xff]
  %v54 = vld [vmem:[%s0 + $0xd0] sm:$0xff]
  %v55 = vld [vmem:[%s0 + $0xd8] sm:$0xff]
  %v56 = vld [vmem:[%s0 + $0xe0] sm:$0xff]
  %v57 = vld [vmem:[%s0 + $0xe8] sm:$0xff]
  %v58 = vld [vmem:[%s0 + $0xf0] sm:$0xff]
  %v59 = vld [vmem:[%s0 + $0xf8] sm:$0xff]
  %v60 = vld [vmem:[%s0 + $0x100] sm:$0xff]
  %v61 = vld [vmem:[%s0 + $0x108] sm:$0xff]
  %v62 = vld [vmem:[%s0 + $0x110] sm:$0xff]
  %v63 = vld [vmem:[%s0 + $0x118] sm:$0xff]
  %v64 = vld [vmem:[%s0 + $0x120] sm:$0xff]
  %v65 = vld [vmem:[%s0 + $0x128] sm:$0xff]
  %v66 = vld [vmem:[%s0 + $0x130] sm:$0xff]
  %v67 = vld [vmem:[%s0 + $0x138] sm:$0xff]
  %v68 = vld [vmem:[%s0 + $0x140] sm:$0xff]
  %v69 = vld [vmem:[%s0 + $0x148] sm:$0xff]
  %v70 = vld [vmem:[%s0 + $0x150] sm:$0xff]
  %v71 = vld [vmem:[%s0 + $0x158] sm:$0xff]
  %v72 = vld [vmem:[%s0 + $0x160] sm:$0xff]
  %v73 = vld [vmem:[%s0 + $0x168] sm:$0xff]
  %v74 = vld [vmem:[%s0 + $0x170] sm:$0xff]
  %v75 = vld [vmem:[%s0 + $0x178] sm:$0xff]
  %v76 = vld [vmem:[%s0 + $0x180] sm:$0xff]
  %v77 = vld [vmem:[%s0 + $0x188] sm:$0xff]
  %v78 = vld [vmem:[%s0 + $0x190] sm:$0xff]
  %v79 = vld [vmem:[%s0 + $0x198] sm:$0xff]
  %v80 = vld [vmem:[%s0 + $0x1a0] sm:$0xff]
  %v81 = vld [vmem:[%s0 + $0x1a8] sm:$0xff]
  %v82 = vld [vmem:[%s0 + $0x1b0] sm:$0xff]
  %v83 = vld [vmem:[%s0 + $0x1b8] sm:$0xff]
  %v84 = vld [vmem:[%s0 + $0x1c0] sm:$0xff]
  %v85 = vld [vmem:[%s0 + $0x1c8] sm:$0xff]
  %v86 = vld [vmem:[%s0 + $0x1d0] sm:$0xff]
  %v87 = vld [vmem:[%s0 + $0x1d8] sm:$0xff]
  %v88 = vld [vmem:[%s0 + $0x1e0] sm:$0xff]
  %v89 = vld [vmem:[%s0 + $0x1e8] sm:$0xff]
  %v90 = vld [vmem:[%s0 + $0x1f0] sm:$0xff]
  %v91 = vld [vmem:[%s0 + $0x1f8] sm:$0xff]
  %v92 = vld [vmem:[%s1] sm:$0x1]
  %v94 = vlaneseq
  %v95 = vshrl.u32 %v94, 7
  %v96 = vsub.s32 0, %v95
  %v97 = vrot.slane %v92, %v96
  %v99 = vmul.f32 %v28, %v97
  %v100 = vmul.f32 %v29, %v97
  %v101 = vmul.f32 %v30, %v97
  %v102 = vmul.f32 %v31, %v97
  %v103 = vmul.f32 %v32, %v97
  %v104 = vmul.f32 %v33, %v97
  %v105 = vmul.f32 %v34, %v97
  %v106 = vmul.f32 %v35, %v97
  %v107 = vmul.f32 %v36, %v97
  %v108 = vmul.f32 %v37, %v97
  %v109 = vmul.f32 %v38, %v97
  %v110 = vmul.f32 %v39, %v97
  %v111 = vmul.f32 %v40, %v97
  %v112 = vmul.f32 %v41, %v97
  %v113 = vmul.f32 %v42, %v97
  %v114 = vmul.f32 %v43, %v97
  %v115 = vmul.f32 %v44, %v97
  %v116 = vmul.f32 %v45, %v97
  %v117 = vmul.f32 %v46, %v97
  %v118 = vmul.f32 %v47, %v97
  %v119 = vmul.f32 %v48, %v97
  %v120 = vmul.f32 %v49, %v97
  %v121 = vmul.f32 %v50, %v97
  %v122 = vmul.f32 %v51, %v97
  %v123 = vmul.f32 %v52, %v97
  %v124 = vmul.f32 %v53, %v97
  %v125 = vmul.f32 %v54, %v97
  %v126 = vmul.f32 %v55, %v97
  %v127 = vmul.f32 %v56, %v97
  %v128 = vmul.f32 %v57, %v97
  %v129 = vmul.f32 %v58, %v97
  %v130 = vmul.f32 %v59, %v97
  %v131 = vmul.f32 %v60, %v97
  %v132 = vmul.f32 %v61, %v97
  %v133 = vmul.f32 %v62, %v97
  %v134 = vmul.f32 %v63, %v97
  %v135 = vmul.f32 %v64, %v97
  %v136 = vmul.f32 %v65, %v97
  %v137 = vmul.f32 %v66, %v97
  %v138 = vmul.f32 %v67, %v97
  %v139 = vmul.f32 %v68, %v97
  %v140 = vmul.f32 %v69, %v97
  %v141 = vmul.f32 %v70, %v97
  %v142 = vmul.f32 %v71, %v97
  %v143 = vmul.f32 %v72, %v97
  %v144 = vmul.f32 %v73, %v97
  %v145 = vmul.f32 %v74, %v97
  %v146 = vmul.f32 %v75, %v97
  %v147 = vmul.f32 %v76, %v97
  %v148 = vmul.f32 %v77, %v97
  %v149 = vmul.f32 %v78, %v97
  %v150 = vmul.f32 %v79, %v97
  %v151 = vmul.f32 %v80, %v97
  %v152 = vmul.f32 %v81, %v97
  %v153 = vmul.f32 %v82, %v97
  %v154 = vmul.f32 %v83, %v97
  %v155 = vmul.f32 %v84, %v97
  %v156 = vmul.f32 %v85, %v97
  %v157 = vmul.f32 %v86, %v97
  %v158 = vmul.f32 %v87, %v97
  %v159 = vmul.f32 %v88, %v97
  %v160 = vmul.f32 %v89, %v97
  %v161 = vmul.f32 %v90, %v97
  %v162 = vmul.f32 %v91, %v97
  %v163 = vld [vmem:[%s2] sm:$0x1]
  %v165 = vlaneseq
  %v166 = vshrl.u32 %v165, 7
  %v167 = vsub.s32 0, %v166
  %v168 = vrot.slane %v163, %v167
  %v170 = vadd.f32 %v99, %v168
  %v171 = vadd.f32 %v100, %v168
  %v172 = vadd.f32 %v101, %v168
  %v173 = vadd.f32 %v102, %v168
  %v174 = vadd.f32 %v103, %v168
  %v175 = vadd.f32 %v104, %v168
  %v176 = vadd.f32 %v105, %v168
  %v177 = vadd.f32 %v106, %v168
  %v178 = vadd.f32 %v107, %v168
  %v179 = vadd.f32 %v108, %v168
  %v180 = vadd.f32 %v109, %v168
  %v181 = vadd.f32 %v110, %v168
  %v182 = vadd.f32 %v111, %v168
  %v183 = vadd.f32 %v112, %v168
  %v184 = vadd.f32 %v113, %v168
  %v185 = vadd.f32 %v114, %v168
  %v186 = vadd.f32 %v115, %v168
  %v187 = vadd.f32 %v116, %v168
  %v188 = vadd.f32 %v117, %v168
  %v189 = vadd.f32 %v118, %v168
  %v190 = vadd.f32 %v119, %v168
  %v191 = vadd.f32 %v120, %v168
  %v192 = vadd.f32 %v121, %v168
  %v193 = vadd.f32 %v122, %v168
  %v194 = vadd.f32 %v123, %v168
  %v195 = vadd.f32 %v124, %v168
  %v196 = vadd.f32 %v125, %v168
  %v197 = vadd.f32 %v126, %v168
  %v198 = vadd.f32 %v127, %v168
  %v199 = vadd.f32 %v128, %v168
  %v200 = vadd.f32 %v129, %v168
  %v201 = vadd.f32 %v130, %v168
  %v202 = vadd.f32 %v131, %v168
  %v203 = vadd.f32 %v132, %v168
  %v204 = vadd.f32 %v133, %v168
  %v205 = vadd.f32 %v134, %v168
  %v206 = vadd.f32 %v135, %v168
  %v207 = vadd.f32 %v136, %v168
  %v208 = vadd.f32 %v137, %v168
  %v209 = vadd.f32 %v138, %v168
  %v210 = vadd.f32 %v139, %v168
  %v211 = vadd.f32 %v140, %v168
  %v212 = vadd.f32 %v141, %v168
  %v213 = vadd.f32 %v142, %v168
  %v214 = vadd.f32 %v143, %v168
  %v215 = vadd.f32 %v144, %v168
  %v216 = vadd.f32 %v145, %v168
  %v217 = vadd.f32 %v146, %v168
  %v218 = vadd.f32 %v147, %v168
  %v219 = vadd.f32 %v148, %v168
  %v220 = vadd.f32 %v149, %v168
  %v221 = vadd.f32 %v150, %v168
  %v222 = vadd.f32 %v151, %v168
  %v223 = vadd.f32 %v152, %v168
  %v224 = vadd.f32 %v153, %v168
  %v225 = vadd.f32 %v154, %v168
  %v226 = vadd.f32 %v155, %v168
  %v227 = vadd.f32 %v156, %v168
  %v228 = vadd.f32 %v157, %v168
  %v229 = vadd.f32 %v158, %v168
  %v230 = vadd.f32 %v159, %v168
  %v231 = vadd.f32 %v160, %v168
  %v232 = vadd.f32 %v161, %v168
  %v233 = vadd.f32 %v162, %v168
  %vm234 = vcmp.ge.f32.partialorder %v170, 0.0
  %vm235 = vcmp.ge.f32.partialorder %v171, 0.0
  %vm236 = vcmp.ge.f32.partialorder %v172, 0.0
  %vm237 = vcmp.ge.f32.partialorder %v173, 0.0
  %vm238 = vcmp.ge.f32.partialorder %v174, 0.0
  %vm239 = vcmp.ge.f32.partialorder %v175, 0.0
  %vm240 = vcmp.ge.f32.partialorder %v176, 0.0
  %vm241 = vcmp.ge.f32.partialorder %v177, 0.0
  %vm242 = vcmp.ge.f32.partialorder %v178, 0.0
  %vm243 = vcmp.ge.f32.partialorder %v179, 0.0
  %vm244 = vcmp.ge.f32.partialorder %v180, 0.0
  %vm245 = vcmp.ge.f32.partialorder %v181, 0.0
  %vm246 = vcmp.ge.f32.partialorder %v182, 0.0
  %vm247 = vcmp.ge.f32.partialorder %v183, 0.0
  %vm248 = vcmp.ge.f32.partialorder %v184, 0.0
  %vm249 = vcmp.ge.f32.partialorder %v185, 0.0
  %vm250 = vcmp.ge.f32.partialorder %v186, 0.0
  %vm251 = vcmp.ge.f32.partialorder %v187, 0.0
  %vm252 = vcmp.ge.f32.partialorder %v188, 0.0
  %vm253 = vcmp.ge.f32.partialorder %v189, 0.0
  %vm254 = vcmp.ge.f32.partialorder %v190, 0.0
  %vm255 = vcmp.ge.f32.partialorder %v191, 0.0
  %vm256 = vcmp.ge.f32.partialorder %v192, 0.0
  %vm257 = vcmp.ge.f32.partialorder %v193, 0.0
  %vm258 = vcmp.ge.f32.partialorder %v194, 0.0
  %vm259 = vcmp.ge.f32.partialorder %v195, 0.0
  %vm260 = vcmp.ge.f32.partialorder %v196, 0.0
  %vm261 = vcmp.ge.f32.partialorder %v197, 0.0
  %vm262 = vcmp.ge.f32.partialorder %v198, 0.0
  %vm263 = vcmp.ge.f32.partialorder %v199, 0.0
  %vm264 = vcmp.ge.f32.partialorder %v200, 0.0
  %vm265 = vcmp.ge.f32.partialorder %v201, 0.0
  %vm266 = vcmp.ge.f32.partialorder %v202, 0.0
  %vm267 = vcmp.ge.f32.partialorder %v203, 0.0
  %vm268 = vcmp.ge.f32.partialorder %v204, 0.0
  %vm269 = vcmp.ge.f32.partialorder %v205, 0.0
  %vm270 = vcmp.ge.f32.partialorder %v206, 0.0
  %vm271 = vcmp.ge.f32.partialorder %v207, 0.0
  %vm272 = vcmp.ge.f32.partialorder %v208, 0.0
  %vm273 = vcmp.ge.f32.partialorder %v209, 0.0
  %vm274 = vcmp.ge.f32.partialorder %v210, 0.0
  %vm275 = vcmp.ge.f32.partialorder %v211, 0.0
  %vm276 = vcmp.ge.f32.partialorder %v212, 0.0
  %vm277 = vcmp.ge.f32.partialorder %v213, 0.0
  %vm278 = vcmp.ge.f32.partialorder %v214, 0.0
  %vm279 = vcmp.ge.f32.partialorder %v215, 0.0
  %vm280 = vcmp.ge.f32.partialorder %v216, 0.0
  %vm281 = vcmp.ge.f32.partialorder %v217, 0.0
  %vm282 = vcmp.ge.f32.partialorder %v218, 0.0
  %vm283 = vcmp.ge.f32.partialorder %v219, 0.0
  %vm284 = vcmp.ge.f32.partialorder %v220, 0.0
  %vm285 = vcmp.ge.f32.partialorder %v221, 0.0
  %vm286 = vcmp.ge.f32.partialorder %v222, 0.0
  %vm287 = vcmp.ge.f32.partialorder %v223, 0.0
  %vm288 = vcmp.ge.f32.partialorder %v224, 0.0
  %vm289 = vcmp.ge.f32.partialorder %v225, 0.0
  %vm290 = vcmp.ge.f32.partialorder %v226, 0.0
  %vm291 = vcmp.ge.f32.partialorder %v227, 0.0
  %vm292 = vcmp.ge.f32.partialorder %v228, 0.0
  %vm293 = vcmp.ge.f32.partialorder %v229, 0.0
  %vm294 = vcmp.ge.f32.partialorder %v230, 0.0
  %vm295 = vcmp.ge.f32.partialorder %v231, 0.0
  %vm296 = vcmp.ge.f32.partialorder %v232, 0.0
  %vm297 = vcmp.ge.f32.partialorder %v233, 0.0
  %v298 = vmul.f32 %v170, 0.2
  %v299 = vmul.f32 %v171, 0.2
  %v300 = vmul.f32 %v172, 0.2
  %v301 = vmul.f32 %v173, 0.2
  %v302 = vmul.f32 %v174, 0.2
  %v303 = vmul.f32 %v175, 0.2
  %v304 = vmul.f32 %v176, 0.2
  %v305 = vmul.f32 %v177, 0.2
  %v306 = vmul.f32 %v178, 0.2
  %v307 = vmul.f32 %v179, 0.2
  %v308 = vmul.f32 %v180, 0.2
  %v309 = vmul.f32 %v181, 0.2
  %v310 = vmul.f32 %v182, 0.2
  %v311 = vmul.f32 %v183, 0.2
  %v312 = vmul.f32 %v184, 0.2
  %v313 = vmul.f32 %v185, 0.2
  %v314 = vmul.f32 %v186, 0.2
  %v315 = vmul.f32 %v187, 0.2
  %v316 = vmul.f32 %v188, 0.2
  %v317 = vmul.f32 %v189, 0.2
  %v318 = vmul.f32 %v190, 0.2
  %v319 = vmul.f32 %v191, 0.2
  %v320 = vmul.f32 %v192, 0.2
  %v321 = vmul.f32 %v193, 0.2
  %v322 = vmul.f32 %v194, 0.2
  %v323 = vmul.f32 %v195, 0.2
  %v324 = vmul.f32 %v196, 0.2
  %v325 = vmul.f32 %v197, 0.2
  %v326 = vmul.f32 %v198, 0.2
  %v327 = vmul.f32 %v199, 0.2
  %v328 = vmul.f32 %v200, 0.2
  %v329 = vmul.f32 %v201, 0.2
  %v330 = vmul.f32 %v202, 0.2
  %v331 = vmul.f32 %v203, 0.2
  %v332 = vmul.f32 %v204, 0.2
  %v333 = vmul.f32 %v205, 0.2
  %v334 = vmul.f32 %v206, 0.2
  %v335 = vmul.f32 %v207, 0.2
  %v336 = vmul.f32 %v208, 0.2
  %v337 = vmul.f32 %v209, 0.2
  %v338 = vmul.f32 %v210, 0.2
  %v339 = vmul.f32 %v211, 0.2
  %v340 = vmul.f32 %v212, 0.2
  %v341 = vmul.f32 %v213, 0.2
  %v342 = vmul.f32 %v214, 0.2
  %v343 = vmul.f32 %v215, 0.2
  %v344 = vmul.f32 %v216, 0.2
  %v345 = vmul.f32 %v217, 0.2
  %v346 = vmul.f32 %v218, 0.2
  %v347 = vmul.f32 %v219, 0.2
  %v348 = vmul.f32 %v220, 0.2
  %v349 = vmul.f32 %v221, 0.2
  %v350 = vmul.f32 %v222, 0.2
  %v351 = vmul.f32 %v223, 0.2
  %v352 = vmul.f32 %v224, 0.2
  %v353 = vmul.f32 %v225, 0.2
  %v354 = vmul.f32 %v226, 0.2
  %v355 = vmul.f32 %v227, 0.2
  %v356 = vmul.f32 %v228, 0.2
  %v357 = vmul.f32 %v229, 0.2
  %v358 = vmul.f32 %v230, 0.2
  %v359 = vmul.f32 %v231, 0.2
  %v360 = vmul.f32 %v232, 0.2
  %v361 = vmul.f32 %v233, 0.2
  %v362 = vsel %vm234, %v170, %v298
  %v363 = vsel %vm235, %v171, %v299
  %v364 = vsel %vm236, %v172, %v300
  %v365 = vsel %vm237, %v173, %v301
  %v366 = vsel %vm238, %v174, %v302
  %v367 = vsel %vm239, %v175, %v303
  %v368 = vsel %vm240, %v176, %v304
  %v369 = vsel %vm241, %v177, %v305
  %v370 = vsel %vm242, %v178, %v306
  %v371 = vsel %vm243, %v179, %v307
  %v372 = vsel %vm244, %v180, %v308
  %v373 = vsel %vm245, %v181, %v309
  %v374 = vsel %vm246, %v182, %v310
  %v375 = vsel %vm247, %v183, %v311
  %v376 = vsel %vm248, %v184, %v312
  %v377 = vsel %vm249, %v185, %v313
  %v378 = vsel %vm250, %v186, %v314
  %v379 = vsel %vm251, %v187, %v315
  %v380 = vsel %vm252, %v188, %v316
  %v381 = vsel %vm253, %v189, %v317
  %v382 = vsel %vm254, %v190, %v318
  %v383 = vsel %vm255, %v191, %v319
  %v384 = vsel %vm256, %v192, %v320
  %v385 = vsel %vm257, %v193, %v321
  %v386 = vsel %vm258, %v194, %v322
  %v387 = vsel %vm259, %v195, %v323
  %v388 = vsel %vm260, %v196, %v324
  %v389 = vsel %vm261, %v197, %v325
  %v390 = vsel %vm262, %v198, %v326
  %v391 = vsel %vm263, %v199, %v327
  %v392 = vsel %vm264, %v200, %v328
  %v393 = vsel %vm265, %v201, %v329
  %v394 = vsel %vm266, %v202, %v330
  %v395 = vsel %vm267, %v203, %v331
  %v396 = vsel %vm268, %v204, %v332
  %v397 = vsel %vm269, %v205, %v333
  %v398 = vsel %vm270, %v206, %v334
  %v399 = vsel %vm271, %v207, %v335
  %v400 = vsel %vm272, %v208, %v336
  %v401 = vsel %vm273, %v209, %v337
  %v402 = vsel %vm274, %v210, %v338
  %v403 = vsel %vm275, %v211, %v339
  %v404 = vsel %vm276, %v212, %v340
  %v405 = vsel %vm277, %v213, %v341
  %v406 = vsel %vm278, %v214, %v342
  %v407 = vsel %vm279, %v215, %v343
  %v408 = vsel %vm280, %v216, %v344
  %v409 = vsel %vm281, %v217, %v345
  %v410 = vsel %vm282, %v218, %v346
  %v411 = vsel %vm283, %v219, %v347
  %v412 = vsel %vm284, %v220, %v348
  %v413 = vsel %vm285, %v221, %v349
  %v414 = vsel %vm286, %v222, %v350
  %v415 = vsel %vm287, %v223, %v351
  %v416 = vsel %vm288, %v224, %v352
  %v417 = vsel %vm289, %v225, %v353
  %v418 = vsel %vm290, %v226, %v354
  %v419 = vsel %vm291, %v227, %v355
  %v420 = vsel %vm292, %v228, %v356
  %v421 = vsel %vm293, %v229, %v357
  %v422 = vsel %vm294, %v230, %v358
  %v423 = vsel %vm295, %v231, %v359
  %v424 = vsel %vm296, %v232, %v360
  %v425 = vsel %vm297, %v233, %v361
  %vm426 = vcmask 31744
  %427 = vst.msk [vmem:[%s7] sm:$0xff] %vm426, %v362
  %428 = vst.msk [vmem:[%s7 + $0x8] sm:$0xff] %vm426, %v363
  %429 = vst.msk [vmem:[%s7 + $0x10] sm:$0xff] %vm426, %v364
  %430 = vst.msk [vmem:[%s7 + $0x18] sm:$0xff] %vm426, %v365
  %431 = vst.msk [vmem:[%s7 + $0x20] sm:$0xff] %vm426, %v366
  %432 = vst.msk [vmem:[%s7 + $0x28] sm:$0xff] %vm426, %v367
  %433 = vst.msk [vmem:[%s7 + $0x30] sm:$0xff] %vm426, %v368
  %434 = vst.msk [vmem:[%s7 + $0x38] sm:$0xff] %vm426, %v369
  %435 = vst.msk [vmem:[%s7 + $0x40] sm:$0xff] %vm426, %v370
  %436 = vst.msk [vmem:[%s7 + $0x48] sm:$0xff] %vm426, %v371
  %437 = vst.msk [vmem:[%s7 + $0x50] sm:$0xff] %vm426, %v372
  %438 = vst.msk [vmem:[%s7 + $0x58] sm:$0xff] %vm426, %v373
  %439 = vst.msk [vmem:[%s7 + $0x60] sm:$0xff] %vm426, %v374
  %440 = vst.msk [vmem:[%s7 + $0x68] sm:$0xff] %vm426, %v375
  %441 = vst.msk [vmem:[%s7 + $0x70] sm:$0xff] %vm426, %v376
  %442 = vst.msk [vmem:[%s7 + $0x78] sm:$0xff] %vm426, %v377
  %443 = vst.msk [vmem:[%s7 + $0x80] sm:$0xff] %vm426, %v378
  %444 = vst.msk [vmem:[%s7 + $0x88] sm:$0xff] %vm426, %v379
  %445 = vst.msk [vmem:[%s7 + $0x90] sm:$0xff] %vm426, %v380
  %446 = vst.msk [vmem:[%s7 + $0x98] sm:$0xff] %vm426, %v381
  %447 = vst.msk [vmem:[%s7 + $0xa0] sm:$0xff] %vm426, %v382
  %448 = vst.msk [vmem:[%s7 + $0xa8] sm:$0xff] %vm426, %v383
  %449 = vst.msk [vmem:[%s7 + $0xb0] sm:$0xff] %vm426, %v384
  %450 = vst.msk [vmem:[%s7 + $0xb8] sm:$0xff] %vm426, %v385
  %451 = vst.msk [vmem:[%s7 + $0xc0] sm:$0xff] %vm426, %v386
  %452 = vst.msk [vmem:[%s7 + $0xc8] sm:$0xff] %vm426, %v387
  %453 = vst.msk [vmem:[%s7 + $0xd0] sm:$0xff] %vm426, %v388
  %454 = vst.msk [vmem:[%s7 + $0xd8] sm:$0xff] %vm426, %v389
  %455 = vst.msk [vmem:[%s7 + $0xe0] sm:$0xff] %vm426, %v390
  %456 = vst.msk [vmem:[%s7 + $0xe8] sm:$0xff] %vm426, %v391
  %457 = vst.msk [vmem:[%s7 + $0xf0] sm:$0xff] %vm426, %v392
  %458 = vst.msk [vmem:[%s7 + $0xf8] sm:$0xff] %vm426, %v393
  %459 = vst.msk [vmem:[%s7 + $0x100] sm:$0xff] %vm426, %v394
  %460 = vst.msk [vmem:[%s7 + $0x108] sm:$0xff] %vm426, %v395
  %461 = vst.msk [vmem:[%s7 + $0x110] sm:$0xff] %vm426, %v396
  %462 = vst.msk [vmem:[%s7 + $0x118] sm:$0xff] %vm426, %v397
  %463 = vst.msk [vmem:[%s7 + $0x120] sm:$0xff] %vm426, %v398
  %464 = vst.msk [vmem:[%s7 + $0x128] sm:$0xff] %vm426, %v399
  %465 = vst.msk [vmem:[%s7 + $0x130] sm:$0xff] %vm426, %v400
  %466 = vst.msk [vmem:[%s7 + $0x138] sm:$0xff] %vm426, %v401
  %467 = vst.msk [vmem:[%s7 + $0x140] sm:$0xff] %vm426, %v402
  %468 = vst.msk [vmem:[%s7 + $0x148] sm:$0xff] %vm426, %v403
  %469 = vst.msk [vmem:[%s7 + $0x150] sm:$0xff] %vm426, %v404
  %470 = vst.msk [vmem:[%s7 + $0x158] sm:$0xff] %vm426, %v405
  %471 = vst.msk [vmem:[%s7 + $0x160] sm:$0xff] %vm426, %v406
  %472 = vst.msk [vmem:[%s7 + $0x168] sm:$0xff] %vm426, %v407
  %473 = vst.msk [vmem:[%s7 + $0x170] sm:$0xff] %vm426, %v408
  %474 = vst.msk [vmem:[%s7 + $0x178] sm:$0xff] %vm426, %v409
  %475 = vst.msk [vmem:[%s7 + $0x180] sm:$0xff] %vm426, %v410
  %476 = vst.msk [vmem:[%s7 + $0x188] sm:$0xff] %vm426, %v411
  %477 = vst.msk [vmem:[%s7 + $0x190] sm:$0xff] %vm426, %v412
  %478 = vst.msk [vmem:[%s7 + $0x198] sm:$0xff] %vm426, %v413
  %479 = vst.msk [vmem:[%s7 + $0x1a0] sm:$0xff] %vm426, %v414
  %480 = vst.msk [vmem:[%s7 + $0x1a8] sm:$0xff] %vm426, %v415
  %481 = vst.msk [vmem:[%s7 + $0x1b0] sm:$0xff] %vm426, %v416
  %482 = vst.msk [vmem:[%s7 + $0x1b8] sm:$0xff] %vm426, %v417
  %483 = vst.msk [vmem:[%s7 + $0x1c0] sm:$0xff] %vm426, %v418
  %484 = vst.msk [vmem:[%s7 + $0x1c8] sm:$0xff] %vm426, %v419
  %485 = vst.msk [vmem:[%s7 + $0x1d0] sm:$0xff] %vm426, %v420
  %486 = vst.msk [vmem:[%s7 + $0x1d8] sm:$0xff] %vm426, %v421
  %487 = vst.msk [vmem:[%s7 + $0x1e0] sm:$0xff] %vm426, %v422
  %488 = vst.msk [vmem:[%s7 + $0x1e8] sm:$0xff] %vm426, %v423
  %489 = vst.msk [vmem:[%s7 + $0x1f0] sm:$0xff] %vm426, %v424
  %490 = vst.msk [vmem:[%s7 + $0x1f8] sm:$0xff] %vm426, %v425
  %v491 = vld [vmem:[%s3] sm:$0x1]
  %v493 = vlaneseq
  %v494 = vshrl.u32 %v493, 7
  %v495 = vsub.s32 0, %v494
  %v496 = vrot.slane %v491, %v495
  %v498 = vmul.f32 %v28, %v496
  %v499 = vmul.f32 %v29, %v496
  %v500 = vmul.f32 %v30, %v496
  %v501 = vmul.f32 %v31, %v496
  %v502 = vmul.f32 %v32, %v496
  %v503 = vmul.f32 %v33, %v496
  %v504 = vmul.f32 %v34, %v496
  %v505 = vmul.f32 %v35, %v496
  %v506 = vmul.f32 %v36, %v496
  %v507 = vmul.f32 %v37, %v496
  %v508 = vmul.f32 %v38, %v496
  %v509 = vmul.f32 %v39, %v496
  %v510 = vmul.f32 %v40, %v496
  %v511 = vmul.f32 %v41, %v496
  %v512 = vmul.f32 %v42, %v496
  %v513 = vmul.f32 %v43, %v496
  %v514 = vmul.f32 %v44, %v496
  %v515 = vmul.f32 %v45, %v496
  %v516 = vmul.f32 %v46, %v496
  %v517 = vmul.f32 %v47, %v496
  %v518 = vmul.f32 %v48, %v496
  %v519 = vmul.f32 %v49, %v496
  %v520 = vmul.f32 %v50, %v496
  %v521 = vmul.f32 %v51, %v496
  %v522 = vmul.f32 %v52, %v496
  %v523 = vmul.f32 %v53, %v496
  %v524 = vmul.f32 %v54, %v496
  %v525 = vmul.f32 %v55, %v496
  %v526 = vmul.f32 %v56, %v496
  %v527 = vmul.f32 %v57, %v496
  %v528 = vmul.f32 %v58, %v496
  %v529 = vmul.f32 %v59, %v496
  %v530 = vmul.f32 %v60, %v496
  %v531 = vmul.f32 %v61, %v496
  %v532 = vmul.f32 %v62, %v496
  %v533 = vmul.f32 %v63, %v496
  %v534 = vmul.f32 %v64, %v496
  %v535 = vmul.f32 %v65, %v496
  %v536 = vmul.f32 %v66, %v496
  %v537 = vmul.f32 %v67, %v496
  %v538 = vmul.f32 %v68, %v496
  %v539 = vmul.f32 %v69, %v496
  %v540 = vmul.f32 %v70, %v496
  %v541 = vmul.f32 %v71, %v496
  %v542 = vmul.f32 %v72, %v496
  %v543 = vmul.f32 %v73, %v496
  %v544 = vmul.f32 %v74, %v496
  %v545 = vmul.f32 %v75, %v496
  %v546 = vmul.f32 %v76, %v496
  %v547 = vmul.f32 %v77, %v496
  %v548 = vmul.f32 %v78, %v496
  %v549 = vmul.f32 %v79, %v496
  %v550 = vmul.f32 %v80, %v496
  %v551 = vmul.f32 %v81, %v496
  %v552 = vmul.f32 %v82, %v496
  %v553 = vmul.f32 %v83, %v496
  %v554 = vmul.f32 %v84, %v496
  %v555 = vmul.f32 %v85, %v496
  %v556 = vmul.f32 %v86, %v496
  %v557 = vmul.f32 %v87, %v496
  %v558 = vmul.f32 %v88, %v496
  %v559 = vmul.f32 %v89, %v496
  %v560 = vmul.f32 %v90, %v496
  %v561 = vmul.f32 %v91, %v496
  %v562 = vld [vmem:[%s4] sm:$0x1]
  %v564 = vlaneseq
  %v565 = vshrl.u32 %v564, 7
  %v566 = vsub.s32 0, %v565
  %v567 = vrot.slane %v562, %v566
  %v569 = vadd.f32 %v498, %v567
  %v570 = vadd.f32 %v499, %v567
  %v571 = vadd.f32 %v500, %v567
  %v572 = vadd.f32 %v501, %v567
  %v573 = vadd.f32 %v502, %v567
  %v574 = vadd.f32 %v503, %v567
  %v575 = vadd.f32 %v504, %v567
  %v576 = vadd.f32 %v505, %v567
  %v577 = vadd.f32 %v506, %v567
  %v578 = vadd.f32 %v507, %v567
  %v579 = vadd.f32 %v508, %v567
  %v580 = vadd.f32 %v509, %v567
  %v581 = vadd.f32 %v510, %v567
  %v582 = vadd.f32 %v511, %v567
  %v583 = vadd.f32 %v512, %v567
  %v584 = vadd.f32 %v513, %v567
  %v585 = vadd.f32 %v514, %v567
  %v586 = vadd.f32 %v515, %v567
  %v587 = vadd.f32 %v516, %v567
  %v588 = vadd.f32 %v517, %v567
  %v589 = vadd.f32 %v518, %v567
  %v590 = vadd.f32 %v519, %v567
  %v591 = vadd.f32 %v520, %v567
  %v592 = vadd.f32 %v521, %v567
  %v593 = vadd.f32 %v522, %v567
  %v594 = vadd.f32 %v523, %v567
  %v595 = vadd.f32 %v524, %v567
  %v596 = vadd.f32 %v525, %v567
  %v597 = vadd.f32 %v526, %v567
  %v598 = vadd.f32 %v527, %v567
  %v599 = vadd.f32 %v528, %v567
  %v600 = vadd.f32 %v529, %v567
  %v601 = vadd.f32 %v530, %v567
  %v602 = vadd.f32 %v531, %v567
  %v603 = vadd.f32 %v532, %v567
  %v604 = vadd.f32 %v533, %v567
  %v605 = vadd.f32 %v534, %v567
  %v606 = vadd.f32 %v535, %v567
  %v607 = vadd.f32 %v536, %v567
  %v608 = vadd.f32 %v537, %v567
  %v609 = vadd.f32 %v538, %v567
  %v610 = vadd.f32 %v539, %v567
  %v611 = vadd.f32 %v540, %v567
  %v612 = vadd.f32 %v541, %v567
  %v613 = vadd.f32 %v542, %v567
  %v614 = vadd.f32 %v543, %v567
  %v615 = vadd.f32 %v544, %v567
  %v616 = vadd.f32 %v545, %v567
  %v617 = vadd.f32 %v546, %v567
  %v618 = vadd.f32 %v547, %v567
  %v619 = vadd.f32 %v548, %v567
  %v620 = vadd.f32 %v549, %v567
  %v621 = vadd.f32 %v550, %v567
  %v622 = vadd.f32 %v551, %v567
  %v623 = vadd.f32 %v552, %v567
  %v624 = vadd.f32 %v553, %v567
  %v625 = vadd.f32 %v554, %v567
  %v626 = vadd.f32 %v555, %v567
  %v627 = vadd.f32 %v556, %v567
  %v628 = vadd.f32 %v557, %v567
  %v629 = vadd.f32 %v558, %v567
  %v630 = vadd.f32 %v559, %v567
  %v631 = vadd.f32 %v560, %v567
  %v632 = vadd.f32 %v561, %v567
  %vm633 = vcmp.ge.f32.partialorder %v569, 0.0
  %vm634 = vcmp.ge.f32.partialorder %v570, 0.0
  %vm635 = vcmp.ge.f32.partialorder %v571, 0.0
  %vm636 = vcmp.ge.f32.partialorder %v572, 0.0
  %vm637 = vcmp.ge.f32.partialorder %v573, 0.0
  %vm638 = vcmp.ge.f32.partialorder %v574, 0.0
  %vm639 = vcmp.ge.f32.partialorder %v575, 0.0
  %vm640 = vcmp.ge.f32.partialorder %v576, 0.0
  %vm641 = vcmp.ge.f32.partialorder %v577, 0.0
  %vm642 = vcmp.ge.f32.partialorder %v578, 0.0
  %vm643 = vcmp.ge.f32.partialorder %v579, 0.0
  %vm644 = vcmp.ge.f32.partialorder %v580, 0.0
  %vm645 = vcmp.ge.f32.partialorder %v581, 0.0
  %vm646 = vcmp.ge.f32.partialorder %v582, 0.0
  %vm647 = vcmp.ge.f32.partialorder %v583, 0.0
  %vm648 = vcmp.ge.f32.partialorder %v584, 0.0
  %vm649 = vcmp.ge.f32.partialorder %v585, 0.0
  %vm650 = vcmp.ge.f32.partialorder %v586, 0.0
  %vm651 = vcmp.ge.f32.partialorder %v587, 0.0
  %vm652 = vcmp.ge.f32.partialorder %v588, 0.0
  %vm653 = vcmp.ge.f32.partialorder %v589, 0.0
  %vm654 = vcmp.ge.f32.partialorder %v590, 0.0
  %vm655 = vcmp.ge.f32.partialorder %v591, 0.0
  %vm656 = vcmp.ge.f32.partialorder %v592, 0.0
  %vm657 = vcmp.ge.f32.partialorder %v593, 0.0
  %vm658 = vcmp.ge.f32.partialorder %v594, 0.0
  %vm659 = vcmp.ge.f32.partialorder %v595, 0.0
  %vm660 = vcmp.ge.f32.partialorder %v596, 0.0
  %vm661 = vcmp.ge.f32.partialorder %v597, 0.0
  %vm662 = vcmp.ge.f32.partialorder %v598, 0.0
  %vm663 = vcmp.ge.f32.partialorder %v599, 0.0
  %vm664 = vcmp.ge.f32.partialorder %v600, 0.0
  %vm665 = vcmp.ge.f32.partialorder %v601, 0.0
  %vm666 = vcmp.ge.f32.partialorder %v602, 0.0
  %vm667 = vcmp.ge.f32.partialorder %v603, 0.0
  %vm668 = vcmp.ge.f32.partialorder %v604, 0.0
  %vm669 = vcmp.ge.f32.partialorder %v605, 0.0
  %vm670 = vcmp.ge.f32.partialorder %v606, 0.0
  %vm671 = vcmp.ge.f32.partialorder %v607, 0.0
  %vm672 = vcmp.ge.f32.partialorder %v608, 0.0
  %vm673 = vcmp.ge.f32.partialorder %v609, 0.0
  %vm674 = vcmp.ge.f32.partialorder %v610, 0.0
  %vm675 = vcmp.ge.f32.partialorder %v611, 0.0
  %vm676 = vcmp.ge.f32.partialorder %v612, 0.0
  %vm677 = vcmp.ge.f32.partialorder %v613, 0.0
  %vm678 = vcmp.ge.f32.partialorder %v614, 0.0
  %vm679 = vcmp.ge.f32.partialorder %v615, 0.0
  %vm680 = vcmp.ge.f32.partialorder %v616, 0.0
  %vm681 = vcmp.ge.f32.partialorder %v617, 0.0
  %vm682 = vcmp.ge.f32.partialorder %v618, 0.0
  %vm683 = vcmp.ge.f32.partialorder %v619, 0.0
  %vm684 = vcmp.ge.f32.partialorder %v620, 0.0
  %vm685 = vcmp.ge.f32.partialorder %v621, 0.0
  %vm686 = vcmp.ge.f32.partialorder %v622, 0.0
  %vm687 = vcmp.ge.f32.partialorder %v623, 0.0
  %vm688 = vcmp.ge.f32.partialorder %v624, 0.0
  %vm689 = vcmp.ge.f32.partialorder %v625, 0.0
  %vm690 = vcmp.ge.f32.partialorder %v626, 0.0
  %vm691 = vcmp.ge.f32.partialorder %v627, 0.0
  %vm692 = vcmp.ge.f32.partialorder %v628, 0.0
  %vm693 = vcmp.ge.f32.partialorder %v629, 0.0
  %vm694 = vcmp.ge.f32.partialorder %v630, 0.0
  %vm695 = vcmp.ge.f32.partialorder %v631, 0.0
  %vm696 = vcmp.ge.f32.partialorder %v632, 0.0
  %v697 = vmul.f32 %v569, 0.2
  %v698 = vmul.f32 %v570, 0.2
  %v699 = vmul.f32 %v571, 0.2
  %v700 = vmul.f32 %v572, 0.2
  %v701 = vmul.f32 %v573, 0.2
  %v702 = vmul.f32 %v574, 0.2
  %v703 = vmul.f32 %v575, 0.2
  %v704 = vmul.f32 %v576, 0.2
  %v705 = vmul.f32 %v577, 0.2
  %v706 = vmul.f32 %v578, 0.2
  %v707 = vmul.f32 %v579, 0.2
  %v708 = vmul.f32 %v580, 0.2
  %v709 = vmul.f32 %v581, 0.2
  %v710 = vmul.f32 %v582, 0.2
  %v711 = vmul.f32 %v583, 0.2
  %v712 = vmul.f32 %v584, 0.2
  %v713 = vmul.f32 %v585, 0.2
  %v714 = vmul.f32 %v586, 0.2
  %v715 = vmul.f32 %v587, 0.2
  %v716 = vmul.f32 %v588, 0.2
  %v717 = vmul.f32 %v589, 0.2
  %v718 = vmul.f32 %v590, 0.2
  %v719 = vmul.f32 %v591, 0.2
  %v720 = vmul.f32 %v592, 0.2
  %v721 = vmul.f32 %v593, 0.2
  %v722 = vmul.f32 %v594, 0.2
  %v723 = vmul.f32 %v595, 0.2
  %v724 = vmul.f32 %v596, 0.2
  %v725 = vmul.f32 %v597, 0.2
  %v726 = vmul.f32 %v598, 0.2
  %v727 = vmul.f32 %v599, 0.2
  %v728 = vmul.f32 %v600, 0.2
  %v729 = vmul.f32 %v601, 0.2
  %v730 = vmul.f32 %v602, 0.2
  %v731 = vmul.f32 %v603, 0.2
  %v732 = vmul.f32 %v604, 0.2
  %v733 = vmul.f32 %v605, 0.2
  %v734 = vmul.f32 %v606, 0.2
  %v735 = vmul.f32 %v607, 0.2
  %v736 = vmul.f32 %v608, 0.2
  %v737 = vmul.f32 %v609, 0.2
  %v738 = vmul.f32 %v610, 0.2
  %v739 = vmul.f32 %v611, 0.2
  %v740 = vmul.f32 %v612, 0.2
  %v741 = vmul.f32 %v613, 0.2
  %v742 = vmul.f32 %v614, 0.2
  %v743 = vmul.f32 %v615, 0.2
  %v744 = vmul.f32 %v616, 0.2
  %v745 = vmul.f32 %v617, 0.2
  %v746 = vmul.f32 %v618, 0.2
  %v747 = vmul.f32 %v619, 0.2
  %v748 = vmul.f32 %v620, 0.2
  %v749 = vmul.f32 %v621, 0.2
  %v750 = vmul.f32 %v622, 0.2
  %v751 = vmul.f32 %v623, 0.2
  %v752 = vmul.f32 %v624, 0.2
  %v753 = vmul.f32 %v625, 0.2
  %v754 = vmul.f32 %v626, 0.2
  %v755 = vmul.f32 %v627, 0.2
  %v756 = vmul.f32 %v628, 0.2
  %v757 = vmul.f32 %v629, 0.2
  %v758 = vmul.f32 %v630, 0.2
  %v759 = vmul.f32 %v631, 0.2
  %v760 = vmul.f32 %v632, 0.2
  %v761 = vsel %vm633, %v569, %v697
  %v762 = vsel %vm634, %v570, %v698
  %v763 = vsel %vm635, %v571, %v699
  %v764 = vsel %vm636, %v572, %v700
  %v765 = vsel %vm637, %v573, %v701
  %v766 = vsel %vm638, %v574, %v702
  %v767 = vsel %vm639, %v575, %v703
  %v768 = vsel %vm640, %v576, %v704
  %v769 = vsel %vm641, %v577, %v705
  %v770 = vsel %vm642, %v578, %v706
  %v771 = vsel %vm643, %v579, %v707
  %v772 = vsel %vm644, %v580, %v708
  %v773 = vsel %vm645, %v581, %v709
  %v774 = vsel %vm646, %v582, %v710
  %v775 = vsel %vm647, %v583, %v711
  %v776 = vsel %vm648, %v584, %v712
  %v777 = vsel %vm649, %v585, %v713
  %v778 = vsel %vm650, %v586, %v714
  %v779 = vsel %vm651, %v587, %v715
  %v780 = vsel %vm652, %v588, %v716
  %v781 = vsel %vm653, %v589, %v717
  %v782 = vsel %vm654, %v590, %v718
  %v783 = vsel %vm655, %v591, %v719
  %v784 = vsel %vm656, %v592, %v720
  %v785 = vsel %vm657, %v593, %v721
  %v786 = vsel %vm658, %v594, %v722
  %v787 = vsel %vm659, %v595, %v723
  %v788 = vsel %vm660, %v596, %v724
  %v789 = vsel %vm661, %v597, %v725
  %v790 = vsel %vm662, %v598, %v726
  %v791 = vsel %vm663, %v599, %v727
  %v792 = vsel %vm664, %v600, %v728
  %v793 = vsel %vm665, %v601, %v729
  %v794 = vsel %vm666, %v602, %v730
  %v795 = vsel %vm667, %v603, %v731
  %v796 = vsel %vm668, %v604, %v732
  %v797 = vsel %vm669, %v605, %v733
  %v798 = vsel %vm670, %v606, %v734
  %v799 = vsel %vm671, %v607, %v735
  %v800 = vsel %vm672, %v608, %v736
  %v801 = vsel %vm673, %v609, %v737
  %v802 = vsel %vm674, %v610, %v738
  %v803 = vsel %vm675, %v611, %v739
  %v804 = vsel %vm676, %v612, %v740
  %v805 = vsel %vm677, %v613, %v741
  %v806 = vsel %vm678, %v614, %v742
  %v807 = vsel %vm679, %v615, %v743
  %v808 = vsel %vm680, %v616, %v744
  %v809 = vsel %vm681, %v617, %v745
  %v810 = vsel %vm682, %v618, %v746
  %v811 = vsel %vm683, %v619, %v747
  %v812 = vsel %vm684, %v620, %v748
  %v813 = vsel %vm685, %v621, %v749
  %v814 = vsel %vm686, %v622, %v750
  %v815 = vsel %vm687, %v623, %v751
  %v816 = vsel %vm688, %v624, %v752
  %v817 = vsel %vm689, %v625, %v753
  %v818 = vsel %vm690, %v626, %v754
  %v819 = vsel %vm691, %v627, %v755
  %v820 = vsel %vm692, %v628, %v756
  %v821 = vsel %vm693, %v629, %v757
  %v822 = vsel %vm694, %v630, %v758
  %v823 = vsel %vm695, %v631, %v759
  %v824 = vsel %vm696, %v632, %v760
  %v825 = vld [vmem:[%s5] sm:$0xf]
  %v826 = vld [vmem:[%s6] sm:$0x1]
  %v828 = vlaneseq
  %v829 = vshrl.u32 %v828, 7
  %v830 = vsub.s32 0, %v829
  %v831 = vrot.slane %v826, %v830
  %v834 = vsel %vm426, %v761, 0
  %v837 = vsel %vm426, %v762, 0
  %v840 = vsel %vm426, %v763, 0
  %v843 = vsel %vm426, %v764, 0
  %v846 = vsel %vm426, %v765, 0
  %v849 = vsel %vm426, %v766, 0
  %v852 = vsel %vm426, %v767, 0
  %v855 = vsel %vm426, %v768, 0
  %v858 = vsel %vm426, %v769, 0
  %v861 = vsel %vm426, %v770, 0
  %v864 = vsel %vm426, %v771, 0
  %v867 = vsel %vm426, %v772, 0
  %v870 = vsel %vm426, %v773, 0
  %v873 = vsel %vm426, %v774, 0
  %v876 = vsel %vm426, %v775, 0
  %v879 = vsel %vm426, %v776, 0
  %v882 = vsel %vm426, %v777, 0
  %v885 = vsel %vm426, %v778, 0
  %v888 = vsel %vm426, %v779, 0
  %v891 = vsel %vm426, %v780, 0
  %v894 = vsel %vm426, %v781, 0
  %v897 = vsel %vm426, %v782, 0
  %v900 = vsel %vm426, %v783, 0
  %v903 = vsel %vm426, %v784, 0
  %v906 = vsel %vm426, %v785, 0
  %v909 = vsel %vm426, %v786, 0
  %v912 = vsel %vm426, %v787, 0
  %v915 = vsel %vm426, %v788, 0
  %v918 = vsel %vm426, %v789, 0
  %v921 = vsel %vm426, %v790, 0
  %v924 = vsel %vm426, %v791, 0
  %v927 = vsel %vm426, %v792, 0
  %v930 = vsel %vm426, %v793, 0
  %v933 = vsel %vm426, %v794, 0
  %v936 = vsel %vm426, %v795, 0
  %v939 = vsel %vm426, %v796, 0
  %v942 = vsel %vm426, %v797, 0
  %v945 = vsel %vm426, %v798, 0
  %v948 = vsel %vm426, %v799, 0
  %v951 = vsel %vm426, %v800, 0
  %v954 = vsel %vm426, %v801, 0
  %v957 = vsel %vm426, %v802, 0
  %v960 = vsel %vm426, %v803, 0
  %v963 = vsel %vm426, %v804, 0
  %v966 = vsel %vm426, %v805, 0
  %v969 = vsel %vm426, %v806, 0
  %v972 = vsel %vm426, %v807, 0
  %v975 = vsel %vm426, %v808, 0
  %v978 = vsel %vm426, %v809, 0
  %v981 = vsel %vm426, %v810, 0
  %v984 = vsel %vm426, %v811, 0
  %v987 = vsel %vm426, %v812, 0
  %v990 = vsel %vm426, %v813, 0
  %v993 = vsel %vm426, %v814, 0
  %v996 = vsel %vm426, %v815, 0
  %v999 = vsel %vm426, %v816, 0
  %v1002 = vsel %vm426, %v817, 0
  %v1005 = vsel %vm426, %v818, 0
  %v1008 = vsel %vm426, %v819, 0
  %v1011 = vsel %vm426, %v820, 0
  %v1014 = vsel %vm426, %v821, 0
  %v1017 = vsel %vm426, %v822, 0
  %v1020 = vsel %vm426, %v823, 0
  %v1023 = vsel %vm426, %v824, 0
  %vm1025 = vcmask 1043456
  %v1027 = vsel %vm1025, %v825, 0
  %1029 = vmatprep.subr.mxu0 0.0
  %1030 = vmatpush1.msra.mxu0 %v1027
  %1031 = vmatprep.subr.mxu0 0.0
  %1032 = vmatpush1.msra.mxu0 0.0
  %1033 = vmatprep.subr.mxu0 0.0
  %1034 = vmatpush1.msra.mxu0 0.0
  %1035 = vmatprep.subr.mxu0 0.0
  %1036 = vmatpush1.msra.mxu0 0.0
  %1037 = vmatprep.subr.mxu0 0.0
  %1038 = vmatpush1.msra.mxu0 0.0
  %1039 = vmatprep.subr.mxu0 0.0
  %1040 = vmatpush1.msra.mxu0 0.0
  %1041 = vmatprep.subr.mxu0 0.0
  %1042 = vmatpush1.msra.mxu0 0.0
  %1043 = vmatprep.subr.mxu0 0.0
  %1044 = vmatpush1.msra.mxu0 0.0
  %1045 = vmatprep.subr.mxu0 0.0
  %1046 = vmatpush1.msra.mxu0 0.0
  %1047 = vmatprep.subr.mxu0 0.0
  %1048 = vmatpush1.msra.mxu0 0.0
  %1049 = vmatprep.subr.mxu0 0.0
  %1050 = vmatpush1.msra.mxu0 0.0
  %1051 = vmatprep.subr.mxu0 0.0
  %1052 = vmatpush1.msra.mxu0 0.0
  %1053 = vmatprep.subr.mxu0 0.0
  %1054 = vmatpush1.msra.mxu0 0.0
  %1055 = vmatprep.subr.mxu0 0.0
  %1056 = vmatpush1.msra.mxu0 0.0
  %1057 = vmatprep.subr.mxu0 0.0
  %1058 = vmatpush1.msra.mxu0 0.0
  %1059 = vmatprep.subr.mxu0 0.0
  %1060 = vmatpush1.msra.mxu0 0.0
  %1061 = vmatprep.subr.mxu0 0.0
  %1062 = vmatpush1.msra.mxu0 0.0
  %1063 = vmatprep.subr.mxu0 0.0
  %1064 = vmatpush1.msra.mxu0 0.0
  %1065 = vmatprep.subr.mxu0 0.0
  %1066 = vmatpush1.msra.mxu0 0.0
  %1067 = vmatprep.subr.mxu0 0.0
  %1068 = vmatpush1.msra.mxu0 0.0
  %1069 = vmatprep.subr.mxu0 0.0
  %1070 = vmatpush1.msra.mxu0 0.0
  %1071 = vmatprep.subr.mxu0 0.0
  %1072 = vmatpush1.msra.mxu0 0.0
  %1073 = vmatprep.subr.mxu0 0.0
  %1074 = vmatpush1.msra.mxu0 0.0
  %1075 = vmatprep.subr.mxu0 0.0
  %1076 = vmatpush1.msra.mxu0 0.0
  %1077 = vmatprep.subr.mxu0 0.0
  %1078 = vmatpush1.msra.mxu0 0.0
  %1079 = vmatprep.subr.mxu0 0.0
  %1080 = vmatpush1.msra.mxu0 0.0
  %1081 = vmatprep.subr.mxu0 0.0
  %1082 = vmatpush1.msra.mxu0 0.0
  %1083 = vmatprep.subr.mxu0 0.0
  %1084 = vmatpush1.msra.mxu0 0.0
  %1085 = vmatprep.subr.mxu0 0.0
  %1086 = vmatpush1.msra.mxu0 0.0
  %1087 = vmatprep.subr.mxu0 0.0
  %1088 = vmatpush1.msra.mxu0 0.0
  %1089 = vmatprep.subr.mxu0 0.0
  %1090 = vmatpush1.msra.mxu0 0.0
  %1091 = vmatprep.subr.mxu0 0.0
  %1092 = vmatpush1.msra.mxu0 0.0
  %1093 = vmatprep.mubr.f32.mxu0 0.0
  %1094 = vmatmul.mubr.f32.gmra.mrb[0].mxu0 %v834
  %v1095 = vpop.f32.mrb[0].mxu0
  %v1096 = vadd.f32 %v831, %v1095
  %v1097 = vpop.f32.mrb[0].mxu0
  %1098 = vmatprep.mubr.f32.mxu0 0.0
  %1099 = vmatmul.mubr.f32.gmra.mrb[0].mxu0 %v837
  %v1100 = vpop.f32.mrb[0].mxu0
  %v1101 = vadd.f32 %v831, %v1100
  %v1102 = vpop.f32.mrb[0].mxu0
  %1103 = vmatprep.mubr.f32.mxu0 0.0
  %1104 = vmatmul.mubr.f32.gmra.mrb[0].mxu0 %v840
  %v1105 = vpop.f32.mrb[0].mxu0
  %v1106 = vadd.f32 %v831, %v1105
  %v1107 = vpop.f32.mrb[0].mxu0
  %1108 = vmatprep.mubr.f32.mxu0 0.0
  %1109 = vmatmul.mubr.f32.gmra.mrb[0].mxu0 %v843
  %v1110 = vpop.f32.mrb[0].mxu0
  %v1111 = vadd.f32 %v831, %v1110
  %v1112 = vpop.f32.mrb[0].mxu0
  %1113 = vmatprep.mubr.f32.mxu0 0.0
  %1114 = vmatmul.mubr.f32.gmra.mrb[0].mxu0 %v846
  %v1115 = vpop.f32.mrb[0].mxu0
  %v1116 = vadd.f32 %v831, %v1115
  %v1117 = vpop.f32.mrb[0].mxu0
  %1118 = vmatprep.mubr.f32.mxu0 0.0
  %1119 = vmatmul.mubr.f32.gmra.mrb[0].mxu0 %v849
  %v1120 = vpop.f32.mrb[0].mxu0
  %v1121 = vadd.f32 %v831, %v1120
  %v1122 = vpop.f32.mrb[0].mxu0
  %1123 = vmatprep.mubr.f32.mxu0 0.0
  %1124 = vmatmul.mubr.f32.gmra.mrb[0].mxu0 %v852
  %v1125 = vpop.f32.mrb[0].mxu0
  %v1126 = vadd.f32 %v831, %v1125
  %v1127 = vpop.f32.mrb[0].mxu0
  %1128 = vmatprep.mubr.f32.mxu0 0.0
  %1129 = vmatmul.mubr.f32.gmra.mrb[0].mxu0 %v855
  %v1130 = vpop.f32.mrb[0].mxu0
  %v1131 = vadd.f32 %v831, %v1130
  %v1132 = vpop.f32.mrb[0].mxu0
  %1133 = vmatprep.mubr.f32.mxu0 0.0
  %1134 = vmatmul.mubr.f32.gmra.mrb[0].mxu0 %v858
  %v1135 = vpop.f32.mrb[0].mxu0
  %v1136 = vadd.f32 %v831, %v1135
  %v1137 = vpop.f32.mrb[0].mxu0
  %1138 = vmatprep.mubr.f32.mxu0 0.0
  %1139 = vmatmul.mubr.f32.gmra.mrb[0].mxu0 %v861
  %v1140 = vpop.f32.mrb[0].mxu0
  %v1141 = vadd.f32 %v831, %v1140
  %v1142 = vpop.f32.mrb[0].mxu0
  %1143 = vmatprep.mubr.f32.mxu0 0.0
  %1144 = vmatmul.mubr.f32.gmra.mrb[0].mxu0 %v864
  %v1145 = vpop.f32.mrb[0].mxu0
  %v1146 = vadd.f32 %v831, %v1145
  %v1147 = vpop.f32.mrb[0].mxu0
  %1148 = vmatprep.mubr.f32.mxu0 0.0
  %1149 = vmatmul.mubr.f32.gmra.mrb[0].mxu0 %v867
  %v1150 = vpop.f32.mrb[0].mxu0
  %v1151 = vadd.f32 %v831, %v1150
  %v1152 = vpop.f32.mrb[0].mxu0
  %1153 = vmatprep.mubr.f32.mxu0 0.0
  %1154 = vmatmul.mubr.f32.gmra.mrb[0].mxu0 %v870
  %v1155 = vpop.f32.mrb[0].mxu0
  %v1156 = vadd.f32 %v831, %v1155
  %v1157 = vpop.f32.mrb[0].mxu0
  %1158 = vmatprep.mubr.f32.mxu0 0.0
  %1159 = vmatmul.mubr.f32.gmra.mrb[0].mxu0 %v873
  %v1160 = vpop.f32.mrb[0].mxu0
  %v1161 = vadd.f32 %v831, %v1160
  %v1162 = vpop.f32.mrb[0].mxu0
  %1163 = vmatprep.mubr.f32.mxu0 0.0
  %1164 = vmatmul.mubr.f32.gmra.mrb[0].mxu0 %v876
  %v1165 = vpop.f32.mrb[0].mxu0
  %v1166 = vadd.f32 %v831, %v1165
  %v1167 = vpop.f32.mrb[0].mxu0
  %1168 = vmatprep.mubr.f32.mxu0 0.0
  %1169 = vmatmul.mubr.f32.gmra.mrb[0].mxu0 %v879
  %v1170 = vpop.f32.mrb[0].mxu0
  %v1171 = vadd.f32 %v831, %v1170
  %v1172 = vpop.f32.mrb[0].mxu0
  %1173 = vmatprep.mubr.f32.mxu0 0.0
  %1174 = vmatmul.mubr.f32.gmra.mrb[0].mxu0 %v882
  %v1175 = vpop.f32.mrb[0].mxu0
  %v1176 = vadd.f32 %v831, %v1175
  %v1177 = vpop.f32.mrb[0].mxu0
  %1178 = vmatprep.mubr.f32.mxu0 0.0
  %1179 = vmatmul.mubr.f32.gmra.mrb[0].mxu0 %v885
  %v1180 = vpop.f32.mrb[0].mxu0
  %v1181 = vadd.f32 %v831, %v1180
  %v1182 = vpop.f32.mrb[0].mxu0
  %1183 = vmatprep.mubr.f32.mxu0 0.0
  %1184 = vmatmul.mubr.f32.gmra.mrb[0].mxu0 %v888
  %v1185 = vpop.f32.mrb[0].mxu0
  %v1186 = vadd.f32 %v831, %v1185
  %v1187 = vpop.f32.mrb[0].mxu0
  %1188 = vmatprep.mubr.f32.mxu0 0.0
  %1189 = vmatmul.mubr.f32.gmra.mrb[0].mxu0 %v891
  %v1190 = vpop.f32.mrb[0].mxu0
  %v1191 = vadd.f32 %v831, %v1190
  %v1192 = vpop.f32.mrb[0].mxu0
  %1193 = vmatprep.mubr.f32.mxu0 0.0
  %1194 = vmatmul.mubr.f32.gmra.mrb[0].mxu0 %v894
  %v1195 = vpop.f32.mrb[0].mxu0
  %v1196 = vadd.f32 %v831, %v1195
  %v1197 = vpop.f32.mrb[0].mxu0
  %1198 = vmatprep.mubr.f32.mxu0 0.0
  %1199 = vmatmul.mubr.f32.gmra.mrb[0].mxu0 %v897
  %v1200 = vpop.f32.mrb[0].mxu0
  %v1201 = vadd.f32 %v831, %v1200
  %v1202 = vpop.f32.mrb[0].mxu0
  %1203 = vmatprep.mubr.f32.mxu0 0.0
  %1204 = vmatmul.mubr.f32.gmra.mrb[0].mxu0 %v900
  %v1205 = vpop.f32.mrb[0].mxu0
  %v1206 = vadd.f32 %v831, %v1205
  %v1207 = vpop.f32.mrb[0].mxu0
  %1208 = vmatprep.mubr.f32.mxu0 0.0
  %1209 = vmatmul.mubr.f32.gmra.mrb[0].mxu0 %v903
  %v1210 = vpop.f32.mrb[0].mxu0
  %v1211 = vadd.f32 %v831, %v1210
  %v1212 = vpop.f32.mrb[0].mxu0
  %1213 = vmatprep.mubr.f32.mxu0 0.0
  %1214 = vmatmul.mubr.f32.gmra.mrb[0].mxu0 %v906
  %v1215 = vpop.f32.mrb[0].mxu0
  %v1216 = vadd.f32 %v831, %v1215
  %v1217 = vpop.f32.mrb[0].mxu0
  %1218 = vmatprep.mubr.f32.mxu0 0.0
  %1219 = vmatmul.mubr.f32.gmra.mrb[0].mxu0 %v909
  %v1220 = vpop.f32.mrb[0].mxu0
  %v1221 = vadd.f32 %v831, %v1220
  %v1222 = vpop.f32.mrb[0].mxu0
  %1223 = vmatprep.mubr.f32.mxu0 0.0
  %1224 = vmatmul.mubr.f32.gmra.mrb[0].mxu0 %v912
  %v1225 = vpop.f32.mrb[0].mxu0
  %v1226 = vadd.f32 %v831, %v1225
  %v1227 = vpop.f32.mrb[0].mxu0
  %1228 = vmatprep.mubr.f32.mxu0 0.0
  %1229 = vmatmul.mubr.f32.gmra.mrb[0].mxu0 %v915
  %v1230 = vpop.f32.mrb[0].mxu0
  %v1231 = vadd.f32 %v831, %v1230
  %v1232 = vpop.f32.mrb[0].mxu0
  %1233 = vmatprep.mubr.f32.mxu0 0.0
  %1234 = vmatmul.mubr.f32.gmra.mrb[0].mxu0 %v918
  %v1235 = vpop.f32.mrb[0].mxu0
  %v1236 = vadd.f32 %v831, %v1235
  %v1237 = vpop.f32.mrb[0].mxu0
  %1238 = vmatprep.mubr.f32.mxu0 0.0
  %1239 = vmatmul.mubr.f32.gmra.mrb[0].mxu0 %v921
  %v1240 = vpop.f32.mrb[0].mxu0
  %v1241 = vadd.f32 %v831, %v1240
  %v1242 = vpop.f32.mrb[0].mxu0
  %1243 = vmatprep.mubr.f32.mxu0 0.0
  %1244 = vmatmul.mubr.f32.gmra.mrb[0].mxu0 %v924
  %v1245 = vpop.f32.mrb[0].mxu0
  %v1246 = vadd.f32 %v831, %v1245
  %v1247 = vpop.f32.mrb[0].mxu0
  %1248 = vmatprep.mubr.f32.mxu0 0.0
  %1249 = vmatmul.mubr.f32.gmra.mrb[0].mxu0 %v927
  %v1250 = vpop.f32.mrb[0].mxu0
  %v1251 = vadd.f32 %v831, %v1250
  %v1252 = vpop.f32.mrb[0].mxu0
  %1253 = vmatprep.mubr.f32.mxu0 0.0
  %1254 = vmatmul.mubr.f32.gmra.mrb[0].mxu0 %v930
  %v1255 = vpop.f32.mrb[0].mxu0
  %v1256 = vadd.f32 %v831, %v1255
  %v1257 = vpop.f32.mrb[0].mxu0
  %1258 = vmatprep.mubr.f32.mxu0 0.0
  %1259 = vmatmul.mubr.f32.gmra.mrb[0].mxu0 %v933
  %v1260 = vpop.f32.mrb[0].mxu0
  %v1261 = vadd.f32 %v831, %v1260
  %v1262 = vpop.f32.mrb[0].mxu0
  %1263 = vmatprep.mubr.f32.mxu0 0.0
  %1264 = vmatmul.mubr.f32.gmra.mrb[0].mxu0 %v936
  %v1265 = vpop.f32.mrb[0].mxu0
  %v1266 = vadd.f32 %v831, %v1265
  %v1267 = vpop.f32.mrb[0].mxu0
  %1268 = vmatprep.mubr.f32.mxu0 0.0
  %1269 = vmatmul.mubr.f32.gmra.mrb[0].mxu0 %v939
  %v1270 = vpop.f32.mrb[0].mxu0
  %v1271 = vadd.f32 %v831, %v1270
  %v1272 = vpop.f32.mrb[0].mxu0
  %1273 = vmatprep.mubr.f32.mxu0 0.0
  %1274 = vmatmul.mubr.f32.gmra.mrb[0].mxu0 %v942
  %v1275 = vpop.f32.mrb[0].mxu0
  %v1276 = vadd.f32 %v831, %v1275
  %v1277 = vpop.f32.mrb[0].mxu0
  %1278 = vmatprep.mubr.f32.mxu0 0.0
  %1279 = vmatmul.mubr.f32.gmra.mrb[0].mxu0 %v945
  %v1280 = vpop.f32.mrb[0].mxu0
  %v1281 = vadd.f32 %v831, %v1280
  %v1282 = vpop.f32.mrb[0].mxu0
  %1283 = vmatprep.mubr.f32.mxu0 0.0
  %1284 = vmatmul.mubr.f32.gmra.mrb[0].mxu0 %v948
  %v1285 = vpop.f32.mrb[0].mxu0
  %v1286 = vadd.f32 %v831, %v1285
  %v1287 = vpop.f32.mrb[0].mxu0
  %1288 = vmatprep.mubr.f32.mxu0 0.0
  %1289 = vmatmul.mubr.f32.gmra.mrb[0].mxu0 %v951
  %v1290 = vpop.f32.mrb[0].mxu0
  %v1291 = vadd.f32 %v831, %v1290
  %v1292 = vpop.f32.mrb[0].mxu0
  %1293 = vmatprep.mubr.f32.mxu0 0.0
  %1294 = vmatmul.mubr.f32.gmra.mrb[0].mxu0 %v954
  %v1295 = vpop.f32.mrb[0].mxu0
  %v1296 = vadd.f32 %v831, %v1295
  %v1297 = vpop.f32.mrb[0].mxu0
  %1298 = vmatprep.mubr.f32.mxu0 0.0
  %1299 = vmatmul.mubr.f32.gmra.mrb[0].mxu0 %v957
  %v1300 = vpop.f32.mrb[0].mxu0
  %v1301 = vadd.f32 %v831, %v1300
  %v1302 = vpop.f32.mrb[0].mxu0
  %1303 = vmatprep.mubr.f32.mxu0 0.0
  %1304 = vmatmul.mubr.f32.gmra.mrb[0].mxu0 %v960
  %v1305 = vpop.f32.mrb[0].mxu0
  %v1306 = vadd.f32 %v831, %v1305
  %v1307 = vpop.f32.mrb[0].mxu0
  %1308 = vmatprep.mubr.f32.mxu0 0.0
  %1309 = vmatmul.mubr.f32.gmra.mrb[0].mxu0 %v963
  %v1310 = vpop.f32.mrb[0].mxu0
  %v1311 = vadd.f32 %v831, %v1310
  %v1312 = vpop.f32.mrb[0].mxu0
  %1313 = vmatprep.mubr.f32.mxu0 0.0
  %1314 = vmatmul.mubr.f32.gmra.mrb[0].mxu0 %v966
  %v1315 = vpop.f32.mrb[0].mxu0
  %v1316 = vadd.f32 %v831, %v1315
  %v1317 = vpop.f32.mrb[0].mxu0
  %1318 = vmatprep.mubr.f32.mxu0 0.0
  %1319 = vmatmul.mubr.f32.gmra.mrb[0].mxu0 %v969
  %v1320 = vpop.f32.mrb[0].mxu0
  %v1321 = vadd.f32 %v831, %v1320
  %v1322 = vpop.f32.mrb[0].mxu0
  %1323 = vmatprep.mubr.f32.mxu0 0.0
  %1324 = vmatmul.mubr.f32.gmra.mrb[0].mxu0 %v972
  %v1325 = vpop.f32.mrb[0].mxu0
  %v1326 = vadd.f32 %v831, %v1325
  %v1327 = vpop.f32.mrb[0].mxu0
  %1328 = vmatprep.mubr.f32.mxu0 0.0
  %1329 = vmatmul.mubr.f32.gmra.mrb[0].mxu0 %v975
  %v1330 = vpop.f32.mrb[0].mxu0
  %v1331 = vadd.f32 %v831, %v1330
  %v1332 = vpop.f32.mrb[0].mxu0
  %1333 = vmatprep.mubr.f32.mxu0 0.0
  %1334 = vmatmul.mubr.f32.gmra.mrb[0].mxu0 %v978
  %v1335 = vpop.f32.mrb[0].mxu0
  %v1336 = vadd.f32 %v831, %v1335
  %v1337 = vpop.f32.mrb[0].mxu0
  %1338 = vmatprep.mubr.f32.mxu0 0.0
  %1339 = vmatmul.mubr.f32.gmra.mrb[0].mxu0 %v981
  %v1340 = vpop.f32.mrb[0].mxu0
  %v1341 = vadd.f32 %v831, %v1340
  %v1342 = vpop.f32.mrb[0].mxu0
  %1343 = vmatprep.mubr.f32.mxu0 0.0
  %1344 = vmatmul.mubr.f32.gmra.mrb[0].mxu0 %v984
  %v1345 = vpop.f32.mrb[0].mxu0
  %v1346 = vadd.f32 %v831, %v1345
  %v1347 = vpop.f32.mrb[0].mxu0
  %1348 = vmatprep.mubr.f32.mxu0 0.0
  %1349 = vmatmul.mubr.f32.gmra.mrb[0].mxu0 %v987
  %v1350 = vpop.f32.mrb[0].mxu0
  %v1351 = vadd.f32 %v831, %v1350
  %v1352 = vpop.f32.mrb[0].mxu0
  %1353 = vmatprep.mubr.f32.mxu0 0.0
  %1354 = vmatmul.mubr.f32.gmra.mrb[0].mxu0 %v990
  %v1355 = vpop.f32.mrb[0].mxu0
  %v1356 = vadd.f32 %v831, %v1355
  %v1357 = vpop.f32.mrb[0].mxu0
  %1358 = vmatprep.mubr.f32.mxu0 0.0
  %1359 = vmatmul.mubr.f32.gmra.mrb[0].mxu0 %v993
  %v1360 = vpop.f32.mrb[0].mxu0
  %v1361 = vadd.f32 %v831, %v1360
  %v1362 = vpop.f32.mrb[0].mxu0
  %1363 = vmatprep.mubr.f32.mxu0 0.0
  %1364 = vmatmul.mubr.f32.gmra.mrb[0].mxu0 %v996
  %v1365 = vpop.f32.mrb[0].mxu0
  %v1366 = vadd.f32 %v831, %v1365
  %v1367 = vpop.f32.mrb[0].mxu0
  %1368 = vmatprep.mubr.f32.mxu0 0.0
  %1369 = vmatmul.mubr.f32.gmra.mrb[0].mxu0 %v999
  %v1370 = vpop.f32.mrb[0].mxu0
  %v1371 = vadd.f32 %v831, %v1370
  %v1372 = vpop.f32.mrb[0].mxu0
  %1373 = vmatprep.mubr.f32.mxu0 0.0
  %1374 = vmatmul.mubr.f32.gmra.mrb[0].mxu0 %v1002
  %v1375 = vpop.f32.mrb[0].mxu0
  %v1376 = vadd.f32 %v831, %v1375
  %v1377 = vpop.f32.mrb[0].mxu0
  %1378 = vmatprep.mubr.f32.mxu0 0.0
  %1379 = vmatmul.mubr.f32.gmra.mrb[0].mxu0 %v1005
  %v1380 = vpop.f32.mrb[0].mxu0
  %v1381 = vadd.f32 %v831, %v1380
  %v1382 = vpop.f32.mrb[0].mxu0
  %1383 = vmatprep.mubr.f32.mxu0 0.0
  %1384 = vmatmul.mubr.f32.gmra.mrb[0].mxu0 %v1008
  %v1385 = vpop.f32.mrb[0].mxu0
  %v1386 = vadd.f32 %v831, %v1385
  %v1387 = vpop.f32.mrb[0].mxu0
  %1388 = vmatprep.mubr.f32.mxu0 0.0
  %1389 = vmatmul.mubr.f32.gmra.mrb[0].mxu0 %v1011
  %v1390 = vpop.f32.mrb[0].mxu0
  %v1391 = vadd.f32 %v831, %v1390
  %v1392 = vpop.f32.mrb[0].mxu0
  %1393 = vmatprep.mubr.f32.mxu0 0.0
  %1394 = vmatmul.mubr.f32.gmra.mrb[0].mxu0 %v1014
  %v1395 = vpop.f32.mrb[0].mxu0
  %v1396 = vadd.f32 %v831, %v1395
  %v1397 = vpop.f32.mrb[0].mxu0
  %1398 = vmatprep.mubr.f32.mxu0 0.0
  %1399 = vmatmul.mubr.f32.gmra.mrb[0].mxu0 %v1017
  %v1400 = vpop.f32.mrb[0].mxu0
  %v1401 = vadd.f32 %v831, %v1400
  %v1402 = vpop.f32.mrb[0].mxu0
  %1403 = vmatprep.mubr.f32.mxu0 0.0
  %1404 = vmatmul.mubr.f32.gmra.mrb[0].mxu0 %v1020
  %v1405 = vpop.f32.mrb[0].mxu0
  %v1406 = vadd.f32 %v831, %v1405
  %v1407 = vpop.f32.mrb[0].mxu0
  %1408 = vmatprep.mubr.f32.mxu0 0.0
  %1409 = vmatmul.mubr.f32.gmra.mrb[0].mxu0 %v1023
  %v1410 = vpop.f32.mrb[0].mxu0
  %v1411 = vadd.f32 %v831, %v1410
  %v1412 = vpop.f32.mrb[0].mxu0
  %1413 = vdwg.mxu0
  %vm1414 = vcmp.ge.f32.partialorder %v1096, 0.0
  %vm1415 = vcmp.ge.f32.partialorder %v1101, 0.0
  %vm1416 = vcmp.ge.f32.partialorder %v1106, 0.0
  %vm1417 = vcmp.ge.f32.partialorder %v1111, 0.0
  %vm1418 = vcmp.ge.f32.partialorder %v1116, 0.0
  %vm1419 = vcmp.ge.f32.partialorder %v1121, 0.0
  %vm1420 = vcmp.ge.f32.partialorder %v1126, 0.0
  %vm1421 = vcmp.ge.f32.partialorder %v1131, 0.0
  %vm1422 = vcmp.ge.f32.partialorder %v1136, 0.0
  %vm1423 = vcmp.ge.f32.partialorder %v1141, 0.0
  %vm1424 = vcmp.ge.f32.partialorder %v1146, 0.0
  %vm1425 = vcmp.ge.f32.partialorder %v1151, 0.0
  %vm1426 = vcmp.ge.f32.partialorder %v1156, 0.0
  %vm1427 = vcmp.ge.f32.partialorder %v1161, 0.0
  %vm1428 = vcmp.ge.f32.partialorder %v1166, 0.0
  %vm1429 = vcmp.ge.f32.partialorder %v1171, 0.0
  %vm1430 = vcmp.ge.f32.partialorder %v1176, 0.0
  %vm1431 = vcmp.ge.f32.partialorder %v1181, 0.0
  %vm1432 = vcmp.ge.f32.partialorder %v1186, 0.0
  %vm1433 = vcmp.ge.f32.partialorder %v1191, 0.0
  %vm1434 = vcmp.ge.f32.partialorder %v1196, 0.0
  %vm1435 = vcmp.ge.f32.partialorder %v1201, 0.0
  %vm1436 = vcmp.ge.f32.partialorder %v1206, 0.0
  %vm1437 = vcmp.ge.f32.partialorder %v1211, 0.0
  %vm1438 = vcmp.ge.f32.partialorder %v1216, 0.0
  %vm1439 = vcmp.ge.f32.partialorder %v1221, 0.0
  %vm1440 = vcmp.ge.f32.partialorder %v1226, 0.0
  %vm1441 = vcmp.ge.f32.partialorder %v1231, 0.0
  %vm1442 = vcmp.ge.f32.partialorder %v1236, 0.0
  %vm1443 = vcmp.ge.f32.partialorder %v1241, 0.0
  %vm1444 = vcmp.ge.f32.partialorder %v1246, 0.0
  %vm1445 = vcmp.ge.f32.partialorder %v1251, 0.0
  %vm1446 = vcmp.ge.f32.partialorder %v1256, 0.0
  %vm1447 = vcmp.ge.f32.partialorder %v1261, 0.0
  %vm1448 = vcmp.ge.f32.partialorder %v1266, 0.0
  %vm1449 = vcmp.ge.f32.partialorder %v1271, 0.0
  %vm1450 = vcmp.ge.f32.partialorder %v1276, 0.0
  %vm1451 = vcmp.ge.f32.partialorder %v1281, 0.0
  %vm1452 = vcmp.ge.f32.partialorder %v1286, 0.0
  %vm1453 = vcmp.ge.f32.partialorder %v1291, 0.0
  %vm1454 = vcmp.ge.f32.partialorder %v1296, 0.0
  %vm1455 = vcmp.ge.f32.partialorder %v1301, 0.0
  %vm1456 = vcmp.ge.f32.partialorder %v1306, 0.0
  %vm1457 = vcmp.ge.f32.partialorder %v1311, 0.0
  %vm1458 = vcmp.ge.f32.partialorder %v1316, 0.0
  %vm1459 = vcmp.ge.f32.partialorder %v1321, 0.0
  %vm1460 = vcmp.ge.f32.partialorder %v1326, 0.0
  %vm1461 = vcmp.ge.f32.partialorder %v1331, 0.0
  %vm1462 = vcmp.ge.f32.partialorder %v1336, 0.0
  %vm1463 = vcmp.ge.f32.partialorder %v1341, 0.0
  %vm1464 = vcmp.ge.f32.partialorder %v1346, 0.0
  %vm1465 = vcmp.ge.f32.partialorder %v1351, 0.0
  %vm1466 = vcmp.ge.f32.partialorder %v1356, 0.0
  %vm1467 = vcmp.ge.f32.partialorder %v1361, 0.0
  %vm1468 = vcmp.ge.f32.partialorder %v1366, 0.0
  %vm1469 = vcmp.ge.f32.partialorder %v1371, 0.0
  %vm1470 = vcmp.ge.f32.partialorder %v1376, 0.0
  %vm1471 = vcmp.ge.f32.partialorder %v1381, 0.0
  %vm1472 = vcmp.ge.f32.partialorder %v1386, 0.0
  %vm1473 = vcmp.ge.f32.partialorder %v1391, 0.0
  %vm1474 = vcmp.ge.f32.partialorder %v1396, 0.0
  %vm1475 = vcmp.ge.f32.partialorder %v1401, 0.0
  %vm1476 = vcmp.ge.f32.partialorder %v1406, 0.0
  %vm1477 = vcmp.ge.f32.partialorder %v1411, 0.0
  %v1478 = vmul.f32 %v1096, 0.2
  %v1479 = vmul.f32 %v1101, 0.2
  %v1480 = vmul.f32 %v1106, 0.2
  %v1481 = vmul.f32 %v1111, 0.2
  %v1482 = vmul.f32 %v1116, 0.2
  %v1483 = vmul.f32 %v1121, 0.2
  %v1484 = vmul.f32 %v1126, 0.2
  %v1485 = vmul.f32 %v1131, 0.2
  %v1486 = vmul.f32 %v1136, 0.2
  %v1487 = vmul.f32 %v1141, 0.2
  %v1488 = vmul.f32 %v1146, 0.2
  %v1489 = vmul.f32 %v1151, 0.2
  %v1490 = vmul.f32 %v1156, 0.2
  %v1491 = vmul.f32 %v1161, 0.2
  %v1492 = vmul.f32 %v1166, 0.2
  %v1493 = vmul.f32 %v1171, 0.2
  %v1494 = vmul.f32 %v1176, 0.2
  %v1495 = vmul.f32 %v1181, 0.2
  %v1496 = vmul.f32 %v1186, 0.2
  %v1497 = vmul.f32 %v1191, 0.2
  %v1498 = vmul.f32 %v1196, 0.2
  %v1499 = vmul.f32 %v1201, 0.2
  %v1500 = vmul.f32 %v1206, 0.2
  %v1501 = vmul.f32 %v1211, 0.2
  %v1502 = vmul.f32 %v1216, 0.2
  %v1503 = vmul.f32 %v1221, 0.2
  %v1504 = vmul.f32 %v1226, 0.2
  %v1505 = vmul.f32 %v1231, 0.2
  %v1506 = vmul.f32 %v1236, 0.2
  %v1507 = vmul.f32 %v1241, 0.2
  %v1508 = vmul.f32 %v1246, 0.2
  %v1509 = vmul.f32 %v1251, 0.2
  %v1510 = vmul.f32 %v1256, 0.2
  %v1511 = vmul.f32 %v1261, 0.2
  %v1512 = vmul.f32 %v1266, 0.2
  %v1513 = vmul.f32 %v1271, 0.2
  %v1514 = vmul.f32 %v1276, 0.2
  %v1515 = vmul.f32 %v1281, 0.2
  %v1516 = vmul.f32 %v1286, 0.2
  %v1517 = vmul.f32 %v1291, 0.2
  %v1518 = vmul.f32 %v1296, 0.2
  %v1519 = vmul.f32 %v1301, 0.2
  %v1520 = vmul.f32 %v1306, 0.2
  %v1521 = vmul.f32 %v1311, 0.2
  %v1522 = vmul.f32 %v1316, 0.2
  %v1523 = vmul.f32 %v1321, 0.2
  %v1524 = vmul.f32 %v1326, 0.2
  %v1525 = vmul.f32 %v1331, 0.2
  %v1526 = vmul.f32 %v1336, 0.2
  %v1527 = vmul.f32 %v1341, 0.2
  %v1528 = vmul.f32 %v1346, 0.2
  %v1529 = vmul.f32 %v1351, 0.2
  %v1530 = vmul.f32 %v1356, 0.2
  %v1531 = vmul.f32 %v1361, 0.2
  %v1532 = vmul.f32 %v1366, 0.2
  %v1533 = vmul.f32 %v1371, 0.2
  %v1534 = vmul.f32 %v1376, 0.2
  %v1535 = vmul.f32 %v1381, 0.2
  %v1536 = vmul.f32 %v1386, 0.2
  %v1537 = vmul.f32 %v1391, 0.2
  %v1538 = vmul.f32 %v1396, 0.2
  %v1539 = vmul.f32 %v1401, 0.2
  %v1540 = vmul.f32 %v1406, 0.2
  %v1541 = vmul.f32 %v1411, 0.2
  %v1542 = vsel %vm1414, %v1096, %v1478
  %v1543 = vsel %vm1415, %v1101, %v1479
  %v1544 = vsel %vm1416, %v1106, %v1480
  %v1545 = vsel %vm1417, %v1111, %v1481
  %v1546 = vsel %vm1418, %v1116, %v1482
  %v1547 = vsel %vm1419, %v1121, %v1483
  %v1548 = vsel %vm1420, %v1126, %v1484
  %v1549 = vsel %vm1421, %v1131, %v1485
  %v1550 = vsel %vm1422, %v1136, %v1486
  %v1551 = vsel %vm1423, %v1141, %v1487
  %v1552 = vsel %vm1424, %v1146, %v1488
  %v1553 = vsel %vm1425, %v1151, %v1489
  %v1554 = vsel %vm1426, %v1156, %v1490
  %v1555 = vsel %vm1427, %v1161, %v1491
  %v1556 = vsel %vm1428, %v1166, %v1492
  %v1557 = vsel %vm1429, %v1171, %v1493
  %v1558 = vsel %vm1430, %v1176, %v1494
  %v1559 = vsel %vm1431, %v1181, %v1495
  %v1560 = vsel %vm1432, %v1186, %v1496
  %v1561 = vsel %vm1433, %v1191, %v1497
  %v1562 = vsel %vm1434, %v1196, %v1498
  %v1563 = vsel %vm1435, %v1201, %v1499
  %v1564 = vsel %vm1436, %v1206, %v1500
  %v1565 = vsel %vm1437, %v1211, %v1501
  %v1566 = vsel %vm1438, %v1216, %v1502
  %v1567 = vsel %vm1439, %v1221, %v1503
  %v1568 = vsel %vm1440, %v1226, %v1504
  %v1569 = vsel %vm1441, %v1231, %v1505
  %v1570 = vsel %vm1442, %v1236, %v1506
  %v1571 = vsel %vm1443, %v1241, %v1507
  %v1572 = vsel %vm1444, %v1246, %v1508
  %v1573 = vsel %vm1445, %v1251, %v1509
  %v1574 = vsel %vm1446, %v1256, %v1510
  %v1575 = vsel %vm1447, %v1261, %v1511
  %v1576 = vsel %vm1448, %v1266, %v1512
  %v1577 = vsel %vm1449, %v1271, %v1513
  %v1578 = vsel %vm1450, %v1276, %v1514
  %v1579 = vsel %vm1451, %v1281, %v1515
  %v1580 = vsel %vm1452, %v1286, %v1516
  %v1581 = vsel %vm1453, %v1291, %v1517
  %v1582 = vsel %vm1454, %v1296, %v1518
  %v1583 = vsel %vm1455, %v1301, %v1519
  %v1584 = vsel %vm1456, %v1306, %v1520
  %v1585 = vsel %vm1457, %v1311, %v1521
  %v1586 = vsel %vm1458, %v1316, %v1522
  %v1587 = vsel %vm1459, %v1321, %v1523
  %v1588 = vsel %vm1460, %v1326, %v1524
  %v1589 = vsel %vm1461, %v1331, %v1525
  %v1590 = vsel %vm1462, %v1336, %v1526
  %v1591 = vsel %vm1463, %v1341, %v1527
  %v1592 = vsel %vm1464, %v1346, %v1528
  %v1593 = vsel %vm1465, %v1351, %v1529
  %v1594 = vsel %vm1466, %v1356, %v1530
  %v1595 = vsel %vm1467, %v1361, %v1531
  %v1596 = vsel %vm1468, %v1366, %v1532
  %v1597 = vsel %vm1469, %v1371, %v1533
  %v1598 = vsel %vm1470, %v1376, %v1534
  %v1599 = vsel %vm1471, %v1381, %v1535
  %v1600 = vsel %vm1472, %v1386, %v1536
  %v1601 = vsel %vm1473, %v1391, %v1537
  %v1602 = vsel %vm1474, %v1396, %v1538
  %v1603 = vsel %vm1475, %v1401, %v1539
  %v1604 = vsel %vm1476, %v1406, %v1540
  %v1605 = vsel %vm1477, %v1411, %v1541
  %1606 = vst.msk [vmem:[%s8] sm:$0xff] %vm426, %v1542
  %1607 = vst.msk [vmem:[%s8 + $0x8] sm:$0xff] %vm426, %v1543
  %1608 = vst.msk [vmem:[%s8 + $0x10] sm:$0xff] %vm426, %v1544
  %1609 = vst.msk [vmem:[%s8 + $0x18] sm:$0xff] %vm426, %v1545
  %1610 = vst.msk [vmem:[%s8 + $0x20] sm:$0xff] %vm426, %v1546
  %1611 = vst.msk [vmem:[%s8 + $0x28] sm:$0xff] %vm426, %v1547
  %1612 = vst.msk [vmem:[%s8 + $0x30] sm:$0xff] %vm426, %v1548
  %1613 = vst.msk [vmem:[%s8 + $0x38] sm:$0xff] %vm426, %v1549
  %1614 = vst.msk [vmem:[%s8 + $0x40] sm:$0xff] %vm426, %v1550
  %1615 = vst.msk [vmem:[%s8 + $0x48] sm:$0xff] %vm426, %v1551
  %1616 = vst.msk [vmem:[%s8 + $0x50] sm:$0xff] %vm426, %v1552
  %1617 = vst.msk [vmem:[%s8 + $0x58] sm:$0xff] %vm426, %v1553
  %1618 = vst.msk [vmem:[%s8 + $0x60] sm:$0xff] %vm426, %v1554
  %1619 = vst.msk [vmem:[%s8 + $0x68] sm:$0xff] %vm426, %v1555
  %1620 = vst.msk [vmem:[%s8 + $0x70] sm:$0xff] %vm426, %v1556
  %1621 = vst.msk [vmem:[%s8 + $0x78] sm:$0xff] %vm426, %v1557
  %1622 = vst.msk [vmem:[%s8 + $0x80] sm:$0xff] %vm426, %v1558
  %1623 = vst.msk [vmem:[%s8 + $0x88] sm:$0xff] %vm426, %v1559
  %1624 = vst.msk [vmem:[%s8 + $0x90] sm:$0xff] %vm426, %v1560
  %1625 = vst.msk [vmem:[%s8 + $0x98] sm:$0xff] %vm426, %v1561
  %1626 = vst.msk [vmem:[%s8 + $0xa0] sm:$0xff] %vm426, %v1562
  %1627 = vst.msk [vmem:[%s8 + $0xa8] sm:$0xff] %vm426, %v1563
  %1628 = vst.msk [vmem:[%s8 + $0xb0] sm:$0xff] %vm426, %v1564
  %1629 = vst.msk [vmem:[%s8 + $0xb8] sm:$0xff] %vm426, %v1565
  %1630 = vst.msk [vmem:[%s8 + $0xc0] sm:$0xff] %vm426, %v1566
  %1631 = vst.msk [vmem:[%s8 + $0xc8] sm:$0xff] %vm426, %v1567
  %1632 = vst.msk [vmem:[%s8 + $0xd0] sm:$0xff] %vm426, %v1568
  %1633 = vst.msk [vmem:[%s8 + $0xd8] sm:$0xff] %vm426, %v1569
  %1634 = vst.msk [vmem:[%s8 + $0xe0] sm:$0xff] %vm426, %v1570
  %1635 = vst.msk [vmem:[%s8 + $0xe8] sm:$0xff] %vm426, %v1571
  %1636 = vst.msk [vmem:[%s8 + $0xf0] sm:$0xff] %vm426, %v1572
  %1637 = vst.msk [vmem:[%s8 + $0xf8] sm:$0xff] %vm426, %v1573
  %1638 = vst.msk [vmem:[%s8 + $0x100] sm:$0xff] %vm426, %v1574
  %1639 = vst.msk [vmem:[%s8 + $0x108] sm:$0xff] %vm426, %v1575
  %1640 = vst.msk [vmem:[%s8 + $0x110] sm:$0xff] %vm426, %v1576
  %1641 = vst.msk [vmem:[%s8 + $0x118] sm:$0xff] %vm426, %v1577
  %1642 = vst.msk [vmem:[%s8 + $0x120] sm:$0xff] %vm426, %v1578
  %1643 = vst.msk [vmem:[%s8 + $0x128] sm:$0xff] %vm426, %v1579
  %1644 = vst.msk [vmem:[%s8 + $0x130] sm:$0xff] %vm426, %v1580
  %1645 = vst.msk [vmem:[%s8 + $0x138] sm:$0xff] %vm426, %v1581
  %1646 = vst.msk [vmem:[%s8 + $0x140] sm:$0xff] %vm426, %v1582
  %1647 = vst.msk [vmem:[%s8 + $0x148] sm:$0xff] %vm426, %v1583
  %1648 = vst.msk [vmem:[%s8 + $0x150] sm:$0xff] %vm426, %v1584
  %1649 = vst.msk [vmem:[%s8 + $0x158] sm:$0xff] %vm426, %v1585
  %1650 = vst.msk [vmem:[%s8 + $0x160] sm:$0xff] %vm426, %v1586
  %1651 = vst.msk [vmem:[%s8 + $0x168] sm:$0xff] %vm426, %v1587
  %1652 = vst.msk [vmem:[%s8 + $0x170] sm:$0xff] %vm426, %v1588
  %1653 = vst.msk [vmem:[%s8 + $0x178] sm:$0xff] %vm426, %v1589
  %1654 = vst.msk [vmem:[%s8 + $0x180] sm:$0xff] %vm426, %v1590
  %1655 = vst.msk [vmem:[%s8 + $0x188] sm:$0xff] %vm426, %v1591
  %1656 = vst.msk [vmem:[%s8 + $0x190] sm:$0xff] %vm426, %v1592
  %1657 = vst.msk [vmem:[%s8 + $0x198] sm:$0xff] %vm426, %v1593
  %1658 = vst.msk [vmem:[%s8 + $0x1a0] sm:$0xff] %vm426, %v1594
  %1659 = vst.msk [vmem:[%s8 + $0x1a8] sm:$0xff] %vm426, %v1595
  %1660 = vst.msk [vmem:[%s8 + $0x1b0] sm:$0xff] %vm426, %v1596
  %1661 = vst.msk [vmem:[%s8 + $0x1b8] sm:$0xff] %vm426, %v1597
  %1662 = vst.msk [vmem:[%s8 + $0x1c0] sm:$0xff] %vm426, %v1598
  %1663 = vst.msk [vmem:[%s8 + $0x1c8] sm:$0xff] %vm426, %v1599
  %1664 = vst.msk [vmem:[%s8 + $0x1d0] sm:$0xff] %vm426, %v1600
  %1665 = vst.msk [vmem:[%s8 + $0x1d8] sm:$0xff] %vm426, %v1601
  %1666 = vst.msk [vmem:[%s8 + $0x1e0] sm:$0xff] %vm426, %v1602
  %1667 = vst.msk [vmem:[%s8 + $0x1e8] sm:$0xff] %vm426, %v1603
  %1668 = vst.msk [vmem:[%s8 + $0x1f0] sm:$0xff] %vm426, %v1604
  %1669 = vst.msk [vmem:[%s8 + $0x1f8] sm:$0xff] %vm426, %v1605
  // Predicated region
  $region30: #{down_block.2} parent=0 // pred_check
    _
  $region31: #{down_block.2} parent=0 // pred_check_branch
    %1671 = sbr.rel (0) target = $region33
  $region32: #{down_block.2} parent=0 // pred_region
    _
  $region33: #{down_block.2} parent=0 // pred_fallthru
    _
  // Predicated region
  $region34: #{down_block.2} parent=0 // pred_check
    _
  $region35: #{down_block.2} parent=0 // pred_check_branch
    %1673 = sbr.rel (0) target = $region37
  $region36: #{down_block.2} parent=0 // pred_region
    _
  $region37: #{down_block.2} parent=0 // pred_fallthru
    _
  // Predicated region
  $region38: #{down_block.2} parent=0 // pred_check
    _
  $region39: #{down_block.2} parent=0 // pred_check_branch
    %1675 = sbr.rel (0) target = $region41
  $region40: #{down_block.2} parent=0 // pred_region
    _
  $region41: #{down_block.2} parent=0 // pred_fallthru
    _
  // Predicated region
  $region42: #{down_block.2} parent=0 // pred_check
    _
  $region43: #{down_block.2} parent=0 // pred_check_branch
    %1677 = sbr.rel (0) target = $region45
  $region44: #{down_block.2} parent=0 // pred_region
    _
  $region45: #{down_block.2} parent=0 // pred_fallthru
    _

</llo_original>
